<compile_context>
chip_gen: v7x
topology: tpu7x:2x2x1
jax: 0.10.0
libtpu: 0.0.40
codegen_flags: <defaults>
</compile_context>

<pallas_src>
import functools

import jax
import jax.numpy as jnp
from jax.experimental import pallas as pl
from jax.experimental.pallas import tpu as pltpu


def _cnn_lstm_kernel(patches_ref, wconv_ref, bconv_ref,
                     wih0_ref, whh0_ref, b0_ref,
                     w1s_ref, b1_ref,
                     wdec_ref, bdec_ref,
                     out_ref,
                     *, hidden, f2, seq_len, batch):
    H, L, B, F2 = hidden, seq_len, batch, f2
    LB = L * B

    # ---- load all weights / biases once (values; no per-step re-loads) ----
    wconv = wconv_ref[...]          # (6, H)
    bconv = bconv_ref[...]          # (1, H)
    wih0 = wih0_ref[...]            # (H, 4H)
    whh0 = whh0_ref[...]            # (H, 4H)
    b0 = b0_ref[...]                # (1, 4H)
    w1s = w1s_ref[...]              # (2H, 4H)  == [W_ih1; W_hh1]
    b1 = b1_ref[...]                # (1, 4H)

    # ---- non-recurrent preamble -------------------------------------------------
    # Conv1d(k=3,'same') + ReLU for every (timestep, position) in ONE matmul.
    patches = patches_ref[...]      # (F2*L*B, 6), rows p-major then l then b
    conv = jnp.dot(patches, wconv, preferred_element_type=jnp.float32) + bconv
    conv = jnp.maximum(conv, 0.0)   # (F2*L*B, H)

    # MaxPool1d(F2): running max over the F2 position slices (static, VALU only).
    pooled = conv[0:LB]
    for p in range(1, F2):
        pooled = jnp.maximum(pooled, conv[p * LB:(p + 1) * LB])   # (L*B, H)

    # Hoisted layer-0 input projection for all timesteps (no serial dependence).
    x_proj = jnp.dot(pooled, wih0, preferred_element_type=jnp.float32) + b0  # (L*B, 4H)

    # ---- recurrence: per step only h0@W_hh0 + fused [h0|h1]@W1 ------------------
    h0 = jnp.zeros((B, H), jnp.float32)
    c0 = jnp.zeros((B, H), jnp.float32)
    h1 = jnp.zeros((B, H), jnp.float32)
    c1 = jnp.zeros((B, H), jnp.float32)

    def gates(g, c):
        i = jax.nn.sigmoid(g[:, 0 * H:1 * H])
        f = jax.nn.sigmoid(g[:, 1 * H:2 * H])
        gg = jnp.tanh(g[:, 2 * H:3 * H])
        o = jax.nn.sigmoid(g[:, 3 * H:4 * H])
        c_new = f * c + i * gg
        h_new = o * jnp.tanh(c_new)
        return h_new, c_new

    for t in range(L):              # small static L -> fully unrolled, state in vregs
        g0 = x_proj[t * B:(t + 1) * B] + jnp.dot(
            h0, whh0, preferred_element_type=jnp.float32)
        h0, c0 = gates(g0, c0)
        xh1 = jnp.concatenate([h0, h1], axis=-1)          # (B, 2H)
        g1 = jnp.dot(xh1, w1s, preferred_element_type=jnp.float32) + b1
        h1, c1 = gates(g1, c1)

    # decoder (Linear) on the last timestep only (== output[:, -1, :])
    out_ref[...] = (jnp.dot(h1, wdec_ref[...], preferred_element_type=jnp.float32)
                    + bdec_ref[...])


def cnn_lstm_forward(x, params):
    x = x.astype(jnp.float32)
    B, L, F = x.shape
    F2 = F // 2
    w_conv = params["w_conv"]                  # (H, 2, 3)
    H = w_conv.shape[0]
    C = params["w_dec"].shape[0]

    # ---- glue: im2col patches, flat 2D, row = p*(L*B) + l*B + b, taps (c,k) c-major
    xr = jnp.transpose(x, (1, 0, 2)).reshape(L, B, 2, F2)          # (L,B,c,pos)
    xpad = jnp.pad(xr, ((0, 0), (0, 0), (0, 0), (1, 1)))           # 'same' pad
    taps = jnp.stack([xpad[..., k:k + F2] for k in range(3)], axis=-1)  # (L,B,2,F2,3)
    patches = jnp.transpose(taps, (3, 0, 1, 2, 4)).reshape(F2 * L * B, 6)

    # ---- glue: weight layout transforms (in_features, out_features) ----
    wconv_k = jnp.transpose(w_conv, (1, 2, 0)).reshape(6, H)
    bconv_k = params["b_conv"].reshape(1, H)
    wih0_k = params["w_ih0"].T
    whh0_k = params["w_hh0"].T
    b0_k = (params["b_ih0"] + params["b_hh0"]).reshape(1, 4 * H)
    w1s_k = jnp.concatenate([params["w_ih1"].T, params["w_hh1"].T], axis=0)  # (2H,4H)
    b1_k = (params["b_ih1"] + params["b_hh1"]).reshape(1, 4 * H)
    wdec_k = params["w_dec"].T
    bdec_k = params["b_dec"].reshape(1, C)
    # NOTE: at large H (v6e/v7x) the matmul operands could be cast to bf16 here
    # (keeping preferred_element_type=f32); kept f32 at these toy sizes.

    kernel = functools.partial(_cnn_lstm_kernel,
                               hidden=H, f2=F2, seq_len=L, batch=B)

    grid_spec = pltpu.PrefetchScalarGridSpec(
        num_scalar_prefetch=0,
        grid=(1,),                                              # single invocation
        in_specs=[
            pl.BlockSpec((F2 * L * B, 6), lambda i: (0, 0)),    # patches (bulk)
            pl.BlockSpec((6, H), lambda i: (0, 0)),             # conv W
            pl.BlockSpec((1, H), lambda i: (0, 0)),             # conv b
            pl.BlockSpec((H, 4 * H), lambda i: (0, 0)),         # W_ih layer0
            pl.BlockSpec((H, 4 * H), lambda i: (0, 0)),         # W_hh layer0
            pl.BlockSpec((1, 4 * H), lambda i: (0, 0)),         # bias layer0
            pl.BlockSpec((2 * H, 4 * H), lambda i: (0, 0)),     # [W_ih1;W_hh1]
            pl.BlockSpec((1, 4 * H), lambda i: (0, 0)),         # bias layer1
            pl.BlockSpec((H, C), lambda i: (0, 0)),             # decoder W
            pl.BlockSpec((1, C), lambda i: (0, 0)),             # decoder b
        ],
        out_specs=pl.BlockSpec((B, C), lambda i: (0, 0)),
        scratch_shapes=[],
    )

    return pl.pallas_call(
        kernel,
        out_shape=jax.ShapeDtypeStruct((B, C), jnp.float32),
        grid_spec=grid_spec,
        compiler_params=pltpu.CompilerParams(
            dimension_semantics=("arbitrary",)),
    )(patches, wconv_k, bconv_k, wih0_k, whh0_k, b0_k,
      w1s_k, b1_k, wdec_k, bdec_k)


def init_params(key, hidden, class_num):
    # Deterministic synthetic params (PyTorch-style uniform bounds).
    ks = jax.random.split(key, 12)

    def u(k, shape, bound):
        return jax.random.uniform(k, shape, jnp.float32, -bound, bound)

    kc = 1.0 / (2.0 * 3.0) ** 0.5
    kh = 1.0 / float(hidden) ** 0.5
    return {
        "w_conv": u(ks[0], (hidden, 2, 3), kc),
        "b_conv": u(ks[1], (hidden,), kc),
        "w_ih0": u(ks[2], (4 * hidden, hidden), kh),
        "w_hh0": u(ks[3], (4 * hidden, hidden), kh),
        "b_ih0": u(ks[4], (4 * hidden,), kh),
        "b_hh0": u(ks[5], (4 * hidden,), kh),
        "w_ih1": u(ks[6], (4 * hidden, hidden), kh),
        "w_hh1": u(ks[7], (4 * hidden, hidden), kh),
        "b_ih1": u(ks[8], (4 * hidden,), kh),
        "b_hh1": u(ks[9], (4 * hidden,), kh),
        "w_dec": u(ks[10], (class_num, hidden), kh),
        "b_dec": u(ks[11], (class_num,), kh),
    }


def reference_forward(x, params):
    # Pure-JAX mirror of the PyTorch forward (dropout=0, do_bn=False).
    x = x.astype(jnp.float32)
    B, L, F = x.shape
    F2 = F // 2
    H = params["w_conv"].shape[0]
    o = x.reshape(B * L, 2, F2)
    opad = jnp.pad(o, ((0, 0), (0, 0), (1, 1)))
    taps = jnp.stack([opad[:, :, k:k + F2] for k in range(3)], axis=-1)
    conv = (jnp.einsum("hck,ncpk->nhp", params["w_conv"], taps)
            + params["b_conv"][None, :, None])
    conv = jnp.maximum(conv, 0.0)
    pooled = conv.max(axis=-1)                       # (B*L, H)
    seq = pooled.reshape(B, L, H)

    def cell(x_t, h, c, wih, whh, bih, bhh):
        g = x_t @ wih.T + h @ whh.T + bih + bhh
        i = jax.nn.sigmoid(g[:, :H])
        f = jax.nn.sigmoid(g[:, H:2 * H])
        gg = jnp.tanh(g[:, 2 * H:3 * H])
        o_ = jax.nn.sigmoid(g[:, 3 * H:])
        c = f * c + i * gg
        h = o_ * jnp.tanh(c)
        return h, c

    h0 = c0 = h1 = c1 = jnp.zeros((B, H), jnp.float32)
    last = None
    for t in range(L):
        h0, c0 = cell(seq[:, t], h0, c0, params["w_ih0"], params["w_hh0"],
                      params["b_ih0"], params["b_hh0"])
        h1, c1 = cell(h0, h1, c1, params["w_ih1"], params["w_hh1"],
                      params["b_ih1"], params["b_hh1"])
        last = h1
    return last @ params["w_dec"].T + params["b_dec"]


if __name__ == "__main__":
    B, L, features, hidden, class_num = 2, 8, 16, 32, 4
    key = jax.random.PRNGKey(0)
    k_x, k_p = jax.random.split(key)
    x = jax.random.normal(k_x, (B, L, features), dtype=jnp.float32)
    params = init_params(k_p, hidden, class_num)

    out = cnn_lstm_forward(x, params)
    out = jax.block_until_ready(out)

    ref = reference_forward(x, params)
    assert out.shape == (B, class_num), out.shape
    max_err = float(jnp.max(jnp.abs(out - ref)))
    if max_err > 2e-2:
        raise AssertionError(f"kernel/reference mismatch, max abs err = {max_err}")

    print("KERNEL_OK")
</pallas_src>

<mosaic_0001>
module attributes {stable_mosaic.version = 11 : i64} {
  func.func @_cnn_lstm_kernel(%arg0: i32, %arg1: memref<128x6xf32, #tpu.memory_space<vmem>>, %arg2: memref<6x32xf32, #tpu.memory_space<vmem>>, %arg3: memref<1x32xf32, #tpu.memory_space<vmem>>, %arg4: memref<32x128xf32, #tpu.memory_space<vmem>>, %arg5: memref<32x128xf32, #tpu.memory_space<vmem>>, %arg6: memref<1x128xf32, #tpu.memory_space<vmem>>, %arg7: memref<64x128xf32, #tpu.memory_space<vmem>>, %arg8: memref<1x128xf32, #tpu.memory_space<vmem>>, %arg9: memref<32x4xf32, #tpu.memory_space<vmem>>, %arg10: memref<1x4xf32, #tpu.memory_space<vmem>>, %arg11: memref<2x4xf32, #tpu.memory_space<vmem>>) attributes {dimension_semantics = [#tpu.dimension_semantics<arbitrary>], iteration_bounds = array<i64: 1>, scalar_prefetch = 0 : i64, scratch_operands = 0 : i64, tpu.core_type = #tpu.core_type<tc>, window_params = [{pipeline_mode = #tpu.pipeline_mode<synchronous>, transform_indices = @transform_0, window_bounds = array<i64: 128, 6>}, {pipeline_mode = #tpu.pipeline_mode<synchronous>, transform_indices = @transform_1, window_bounds = array<i64: 6, 32>}, {pipeline_mode = #tpu.pipeline_mode<synchronous>, transform_indices = @transform_2, window_bounds = array<i64: 1, 32>}, {pipeline_mode = #tpu.pipeline_mode<synchronous>, transform_indices = @transform_3, window_bounds = array<i64: 32, 128>}, {pipeline_mode = #tpu.pipeline_mode<synchronous>, transform_indices = @transform_4, window_bounds = array<i64: 32, 128>}, {pipeline_mode = #tpu.pipeline_mode<synchronous>, transform_indices = @transform_5, window_bounds = array<i64: 1, 128>}, {pipeline_mode = #tpu.pipeline_mode<synchronous>, transform_indices = @transform_6, window_bounds = array<i64: 64, 128>}, {pipeline_mode = #tpu.pipeline_mode<synchronous>, transform_indices = @transform_7, window_bounds = array<i64: 1, 128>}, {pipeline_mode = #tpu.pipeline_mode<synchronous>, transform_indices = @transform_8, window_bounds = array<i64: 32, 4>}, {pipeline_mode = #tpu.pipeline_mode<synchronous>, transform_indices = @transform_9, window_bounds = array<i64: 1, 4>}, {pipeline_mode = #tpu.pipeline_mode<synchronous>, transform_indices = @transform_10, window_bounds = array<i64: 2, 4>}]} {
    %c0 = arith.constant 0 : index
    %c0_0 = arith.constant 0 : index
    %0 = vector.load %arg2[%c0, %c0_0] : memref<6x32xf32, #tpu.memory_space<vmem>>, vector<6x32xf32>
    %c0_1 = arith.constant 0 : index
    %c0_2 = arith.constant 0 : index
    %1 = vector.load %arg3[%c0_1, %c0_2] : memref<1x32xf32, #tpu.memory_space<vmem>>, vector<1x32xf32>
    %c0_3 = arith.constant 0 : index
    %c0_4 = arith.constant 0 : index
    %2 = vector.load %arg4[%c0_3, %c0_4] : memref<32x128xf32, #tpu.memory_space<vmem>>, vector<32x128xf32>
    %c0_5 = arith.constant 0 : index
    %c0_6 = arith.constant 0 : index
    %3 = vector.load %arg5[%c0_5, %c0_6] : memref<32x128xf32, #tpu.memory_space<vmem>>, vector<32x128xf32>
    %c0_7 = arith.constant 0 : index
    %c0_8 = arith.constant 0 : index
    %4 = vector.load %arg6[%c0_7, %c0_8] : memref<1x128xf32, #tpu.memory_space<vmem>>, vector<1x128xf32>
    %c0_9 = arith.constant 0 : index
    %c0_10 = arith.constant 0 : index
    %5 = vector.load %arg7[%c0_9, %c0_10] : memref<64x128xf32, #tpu.memory_space<vmem>>, vector<64x128xf32>
    %c0_11 = arith.constant 0 : index
    %c0_12 = arith.constant 0 : index
    %6 = vector.load %arg8[%c0_11, %c0_12] : memref<1x128xf32, #tpu.memory_space<vmem>>, vector<1x128xf32>
    %c0_13 = arith.constant 0 : index
    %c0_14 = arith.constant 0 : index
    %7 = vector.load %arg1[%c0_13, %c0_14] : memref<128x6xf32, #tpu.memory_space<vmem>>, vector<128x6xf32>
    %cst = arith.constant dense<0.000000e+00> : vector<128x32xf32>
    %8 = tpu.matmul %7, %0, %cst {dimension_numbers = #tpu.dot_dimension_numbers<[1], [0], [0], [1], [0, 0, 1, 1], [], []>} : vector<128x6xf32>, vector<6x32xf32>, vector<128x32xf32> -> vector<128x32xf32>
    %9 = vector.broadcast %1 : vector<1x32xf32> to vector<128x32xf32>
    %10 = arith.addf %8, %9 : vector<128x32xf32>
    %cst_15 = arith.constant 0.000000e+00 : f32
    %11 = vector.broadcast %cst_15 : f32 to vector<128x32xf32>
    %12 = arith.maximumf %10, %11 : vector<128x32xf32>
    %13 = vector.extract_strided_slice %12 {offsets = [0, 0], sizes = [16, 32], strides = [1, 1]} : vector<128x32xf32> to vector<16x32xf32>
    %14 = vector.extract_strided_slice %12 {offsets = [16, 0], sizes = [16, 32], strides = [1, 1]} : vector<128x32xf32> to vector<16x32xf32>
    %15 = arith.maximumf %13, %14 : vector<16x32xf32>
    %16 = vector.extract_strided_slice %12 {offsets = [32, 0], sizes = [16, 32], strides = [1, 1]} : vector<128x32xf32> to vector<16x32xf32>
    %17 = arith.maximumf %15, %16 : vector<16x32xf32>
    %18 = vector.extract_strided_slice %12 {offsets = [48, 0], sizes = [16, 32], strides = [1, 1]} : vector<128x32xf32> to vector<16x32xf32>
    %19 = arith.maximumf %17, %18 : vector<16x32xf32>
    %20 = vector.extract_strided_slice %12 {offsets = [64, 0], sizes = [16, 32], strides = [1, 1]} : vector<128x32xf32> to vector<16x32xf32>
    %21 = arith.maximumf %19, %20 : vector<16x32xf32>
    %22 = vector.extract_strided_slice %12 {offsets = [80, 0], sizes = [16, 32], strides = [1, 1]} : vector<128x32xf32> to vector<16x32xf32>
    %23 = arith.maximumf %21, %22 : vector<16x32xf32>
    %24 = vector.extract_strided_slice %12 {offsets = [96, 0], sizes = [16, 32], strides = [1, 1]} : vector<128x32xf32> to vector<16x32xf32>
    %25 = arith.maximumf %23, %24 : vector<16x32xf32>
    %26 = vector.extract_strided_slice %12 {offsets = [112, 0], sizes = [16, 32], strides = [1, 1]} : vector<128x32xf32> to vector<16x32xf32>
    %27 = arith.maximumf %25, %26 : vector<16x32xf32>
    %cst_16 = arith.constant dense<0.000000e+00> : vector<16x128xf32>
    %28 = tpu.matmul %27, %2, %cst_16 {dimension_numbers = #tpu.dot_dimension_numbers<[1], [0], [0], [1], [0, 0, 1, 1], [], []>} : vector<16x32xf32>, vector<32x128xf32>, vector<16x128xf32> -> vector<16x128xf32>
    %29 = vector.broadcast %4 : vector<1x128xf32> to vector<16x128xf32>
    %30 = arith.addf %28, %29 : vector<16x128xf32>
    %cst_17 = arith.constant 0.000000e+00 : f32
    %31 = vector.broadcast %cst_17 : f32 to vector<2x32xf32>
    %cst_18 = arith.constant 0.000000e+00 : f32
    %32 = vector.broadcast %cst_18 : f32 to vector<2x32xf32>
    %cst_19 = arith.constant 0.000000e+00 : f32
    %33 = vector.broadcast %cst_19 : f32 to vector<2x32xf32>
    %cst_20 = arith.constant 0.000000e+00 : f32
    %34 = vector.broadcast %cst_20 : f32 to vector<2x32xf32>
    %35 = vector.extract_strided_slice %30 {offsets = [0, 0], sizes = [2, 128], strides = [1, 1]} : vector<16x128xf32> to vector<2x128xf32>
    %cst_21 = arith.constant dense<0.000000e+00> : vector<2x128xf32>
    %36 = tpu.matmul %31, %3, %cst_21 {dimension_numbers = #tpu.dot_dimension_numbers<[1], [0], [0], [1], [0, 0, 1, 1], [], []>} : vector<2x32xf32>, vector<32x128xf32>, vector<2x128xf32> -> vector<2x128xf32>
    %37 = arith.addf %35, %36 : vector<2x128xf32>
    %38 = vector.extract_strided_slice %37 {offsets = [0, 0], sizes = [2, 32], strides = [1, 1]} : vector<2x128xf32> to vector<2x32xf32>
    %39 = arith.negf %38 : vector<2x32xf32>
    %40 = math.exp %39 : vector<2x32xf32>
    %cst_22 = arith.constant 1.000000e+00 : f32
    %41 = vector.broadcast %cst_22 : f32 to vector<2x32xf32>
    %42 = arith.addf %41, %40 : vector<2x32xf32>
    %43 = arith.divf %41, %42 : vector<2x32xf32>
    %44 = vector.extract_strided_slice %37 {offsets = [0, 32], sizes = [2, 32], strides = [1, 1]} : vector<2x128xf32> to vector<2x32xf32>
    %45 = arith.negf %44 : vector<2x32xf32>
    %46 = math.exp %45 : vector<2x32xf32>
    %cst_23 = arith.constant 1.000000e+00 : f32
    %47 = vector.broadcast %cst_23 : f32 to vector<2x32xf32>
    %48 = arith.addf %47, %46 : vector<2x32xf32>
    %49 = arith.divf %47, %48 : vector<2x32xf32>
    %50 = vector.extract_strided_slice %37 {offsets = [0, 64], sizes = [2, 32], strides = [1, 1]} : vector<2x128xf32> to vector<2x32xf32>
    %51 = math.tanh %50 : vector<2x32xf32>
    %52 = vector.extract_strided_slice %37 {offsets = [0, 96], sizes = [2, 32], strides = [1, 1]} : vector<2x128xf32> to vector<2x32xf32>
    %53 = arith.negf %52 : vector<2x32xf32>
    %54 = math.exp %53 : vector<2x32xf32>
    %cst_24 = arith.constant 1.000000e+00 : f32
    %55 = vector.broadcast %cst_24 : f32 to vector<2x32xf32>
    %56 = arith.addf %55, %54 : vector<2x32xf32>
    %57 = arith.divf %55, %56 : vector<2x32xf32>
    %58 = arith.mulf %49, %32 : vector<2x32xf32>
    %59 = arith.mulf %43, %51 : vector<2x32xf32>
    %60 = arith.addf %58, %59 : vector<2x32xf32>
    %61 = math.tanh %60 : vector<2x32xf32>
    %62 = arith.mulf %57, %61 : vector<2x32xf32>
    %63 = tpu.concatenate %62, %33 in 1 : vector<2x32xf32>, vector<2x32xf32> -> vector<2x64xf32>
    %cst_25 = arith.constant dense<0.000000e+00> : vector<2x128xf32>
    %64 = tpu.matmul %63, %5, %cst_25 {dimension_numbers = #tpu.dot_dimension_numbers<[1], [0], [0], [1], [0, 0, 1, 1], [], []>} : vector<2x64xf32>, vector<64x128xf32>, vector<2x128xf32> -> vector<2x128xf32>
    %65 = vector.broadcast %6 : vector<1x128xf32> to vector<2x128xf32>
    %66 = arith.addf %64, %65 : vector<2x128xf32>
    %67 = vector.extract_strided_slice %66 {offsets = [0, 0], sizes = [2, 32], strides = [1, 1]} : vector<2x128xf32> to vector<2x32xf32>
    %68 = arith.negf %67 : vector<2x32xf32>
    %69 = math.exp %68 : vector<2x32xf32>
    %cst_26 = arith.constant 1.000000e+00 : f32
    %70 = vector.broadcast %cst_26 : f32 to vector<2x32xf32>
    %71 = arith.addf %70, %69 : vector<2x32xf32>
    %72 = arith.divf %70, %71 : vector<2x32xf32>
    %73 = vector.extract_strided_slice %66 {offsets = [0, 32], sizes = [2, 32], strides = [1, 1]} : vector<2x128xf32> to vector<2x32xf32>
    %74 = arith.negf %73 : vector<2x32xf32>
    %75 = math.exp %74 : vector<2x32xf32>
    %cst_27 = arith.constant 1.000000e+00 : f32
    %76 = vector.broadcast %cst_27 : f32 to vector<2x32xf32>
    %77 = arith.addf %76, %75 : vector<2x32xf32>
    %78 = arith.divf %76, %77 : vector<2x32xf32>
    %79 = vector.extract_strided_slice %66 {offsets = [0, 64], sizes = [2, 32], strides = [1, 1]} : vector<2x128xf32> to vector<2x32xf32>
    %80 = math.tanh %79 : vector<2x32xf32>
    %81 = vector.extract_strided_slice %66 {offsets = [0, 96], sizes = [2, 32], strides = [1, 1]} : vector<2x128xf32> to vector<2x32xf32>
    %82 = arith.negf %81 : vector<2x32xf32>
    %83 = math.exp %82 : vector<2x32xf32>
    %cst_28 = arith.constant 1.000000e+00 : f32
    %84 = vector.broadcast %cst_28 : f32 to vector<2x32xf32>
    %85 = arith.addf %84, %83 : vector<2x32xf32>
    %86 = arith.divf %84, %85 : vector<2x32xf32>
    %87 = arith.mulf %78, %34 : vector<2x32xf32>
    %88 = arith.mulf %72, %80 : vector<2x32xf32>
    %89 = arith.addf %87, %88 : vector<2x32xf32>
    %90 = math.tanh %89 : vector<2x32xf32>
    %91 = arith.mulf %86, %90 : vector<2x32xf32>
    %92 = vector.extract_strided_slice %30 {offsets = [2, 0], sizes = [2, 128], strides = [1, 1]} : vector<16x128xf32> to vector<2x128xf32>
    %cst_29 = arith.constant dense<0.000000e+00> : vector<2x128xf32>
    %93 = tpu.matmul %62, %3, %cst_29 {dimension_numbers = #tpu.dot_dimension_numbers<[1], [0], [0], [1], [0, 0, 1, 1], [], []>} : vector<2x32xf32>, vector<32x128xf32>, vector<2x128xf32> -> vector<2x128xf32>
    %94 = arith.addf %92, %93 : vector<2x128xf32>
    %95 = vector.extract_strided_slice %94 {offsets = [0, 0], sizes = [2, 32], strides = [1, 1]} : vector<2x128xf32> to vector<2x32xf32>
    %96 = arith.negf %95 : vector<2x32xf32>
    %97 = math.exp %96 : vector<2x32xf32>
    %cst_30 = arith.constant 1.000000e+00 : f32
    %98 = vector.broadcast %cst_30 : f32 to vector<2x32xf32>
    %99 = arith.addf %98, %97 : vector<2x32xf32>
    %100 = arith.divf %98, %99 : vector<2x32xf32>
    %101 = vector.extract_strided_slice %94 {offsets = [0, 32], sizes = [2, 32], strides = [1, 1]} : vector<2x128xf32> to vector<2x32xf32>
    %102 = arith.negf %101 : vector<2x32xf32>
    %103 = math.exp %102 : vector<2x32xf32>
    %cst_31 = arith.constant 1.000000e+00 : f32
    %104 = vector.broadcast %cst_31 : f32 to vector<2x32xf32>
    %105 = arith.addf %104, %103 : vector<2x32xf32>
    %106 = arith.divf %104, %105 : vector<2x32xf32>
    %107 = vector.extract_strided_slice %94 {offsets = [0, 64], sizes = [2, 32], strides = [1, 1]} : vector<2x128xf32> to vector<2x32xf32>
    %108 = math.tanh %107 : vector<2x32xf32>
    %109 = vector.extract_strided_slice %94 {offsets = [0, 96], sizes = [2, 32], strides = [1, 1]} : vector<2x128xf32> to vector<2x32xf32>
    %110 = arith.negf %109 : vector<2x32xf32>
    %111 = math.exp %110 : vector<2x32xf32>
    %cst_32 = arith.constant 1.000000e+00 : f32
    %112 = vector.broadcast %cst_32 : f32 to vector<2x32xf32>
    %113 = arith.addf %112, %111 : vector<2x32xf32>
    %114 = arith.divf %112, %113 : vector<2x32xf32>
    %115 = arith.mulf %106, %60 : vector<2x32xf32>
    %116 = arith.mulf %100, %108 : vector<2x32xf32>
    %117 = arith.addf %115, %116 : vector<2x32xf32>
    %118 = math.tanh %117 : vector<2x32xf32>
    %119 = arith.mulf %114, %118 : vector<2x32xf32>
    %120 = tpu.concatenate %119, %91 in 1 : vector<2x32xf32>, vector<2x32xf32> -> vector<2x64xf32>
    %cst_33 = arith.constant dense<0.000000e+00> : vector<2x128xf32>
    %121 = tpu.matmul %120, %5, %cst_33 {dimension_numbers = #tpu.dot_dimension_numbers<[1], [0], [0], [1], [0, 0, 1, 1], [], []>} : vector<2x64xf32>, vector<64x128xf32>, vector<2x128xf32> -> vector<2x128xf32>
    %122 = vector.broadcast %6 : vector<1x128xf32> to vector<2x128xf32>
    %123 = arith.addf %121, %122 : vector<2x128xf32>
    %124 = vector.extract_strided_slice %123 {offsets = [0, 0], sizes = [2, 32], strides = [1, 1]} : vector<2x128xf32> to vector<2x32xf32>
    %125 = arith.negf %124 : vector<2x32xf32>
    %126 = math.exp %125 : vector<2x32xf32>
    %cst_34 = arith.constant 1.000000e+00 : f32
    %127 = vector.broadcast %cst_34 : f32 to vector<2x32xf32>
    %128 = arith.addf %127, %126 : vector<2x32xf32>
    %129 = arith.divf %127, %128 : vector<2x32xf32>
    %130 = vector.extract_strided_slice %123 {offsets = [0, 32], sizes = [2, 32], strides = [1, 1]} : vector<2x128xf32> to vector<2x32xf32>
    %131 = arith.negf %130 : vector<2x32xf32>
    %132 = math.exp %131 : vector<2x32xf32>
    %cst_35 = arith.constant 1.000000e+00 : f32
    %133 = vector.broadcast %cst_35 : f32 to vector<2x32xf32>
    %134 = arith.addf %133, %132 : vector<2x32xf32>
    %135 = arith.divf %133, %134 : vector<2x32xf32>
    %136 = vector.extract_strided_slice %123 {offsets = [0, 64], sizes = [2, 32], strides = [1, 1]} : vector<2x128xf32> to vector<2x32xf32>
    %137 = math.tanh %136 : vector<2x32xf32>
    %138 = vector.extract_strided_slice %123 {offsets = [0, 96], sizes = [2, 32], strides = [1, 1]} : vector<2x128xf32> to vector<2x32xf32>
    %139 = arith.negf %138 : vector<2x32xf32>
    %140 = math.exp %139 : vector<2x32xf32>
    %cst_36 = arith.constant 1.000000e+00 : f32
    %141 = vector.broadcast %cst_36 : f32 to vector<2x32xf32>
    %142 = arith.addf %141, %140 : vector<2x32xf32>
    %143 = arith.divf %141, %142 : vector<2x32xf32>
    %144 = arith.mulf %135, %89 : vector<2x32xf32>
    %145 = arith.mulf %129, %137 : vector<2x32xf32>
    %146 = arith.addf %144, %145 : vector<2x32xf32>
    %147 = math.tanh %146 : vector<2x32xf32>
    %148 = arith.mulf %143, %147 : vector<2x32xf32>
    %149 = vector.extract_strided_slice %30 {offsets = [4, 0], sizes = [2, 128], strides = [1, 1]} : vector<16x128xf32> to vector<2x128xf32>
    %cst_37 = arith.constant dense<0.000000e+00> : vector<2x128xf32>
    %150 = tpu.matmul %119, %3, %cst_37 {dimension_numbers = #tpu.dot_dimension_numbers<[1], [0], [0], [1], [0, 0, 1, 1], [], []>} : vector<2x32xf32>, vector<32x128xf32>, vector<2x128xf32> -> vector<2x128xf32>
    %151 = arith.addf %149, %150 : vector<2x128xf32>
    %152 = vector.extract_strided_slice %151 {offsets = [0, 0], sizes = [2, 32], strides = [1, 1]} : vector<2x128xf32> to vector<2x32xf32>
    %153 = arith.negf %152 : vector<2x32xf32>
    %154 = math.exp %153 : vector<2x32xf32>
    %cst_38 = arith.constant 1.000000e+00 : f32
    %155 = vector.broadcast %cst_38 : f32 to vector<2x32xf32>
    %156 = arith.addf %155, %154 : vector<2x32xf32>
    %157 = arith.divf %155, %156 : vector<2x32xf32>
    %158 = vector.extract_strided_slice %151 {offsets = [0, 32], sizes = [2, 32], strides = [1, 1]} : vector<2x128xf32> to vector<2x32xf32>
    %159 = arith.negf %158 : vector<2x32xf32>
    %160 = math.exp %159 : vector<2x32xf32>
    %cst_39 = arith.constant 1.000000e+00 : f32
    %161 = vector.broadcast %cst_39 : f32 to vector<2x32xf32>
    %162 = arith.addf %161, %160 : vector<2x32xf32>
    %163 = arith.divf %161, %162 : vector<2x32xf32>
    %164 = vector.extract_strided_slice %151 {offsets = [0, 64], sizes = [2, 32], strides = [1, 1]} : vector<2x128xf32> to vector<2x32xf32>
    %165 = math.tanh %164 : vector<2x32xf32>
    %166 = vector.extract_strided_slice %151 {offsets = [0, 96], sizes = [2, 32], strides = [1, 1]} : vector<2x128xf32> to vector<2x32xf32>
    %167 = arith.negf %166 : vector<2x32xf32>
    %168 = math.exp %167 : vector<2x32xf32>
    %cst_40 = arith.constant 1.000000e+00 : f32
    %169 = vector.broadcast %cst_40 : f32 to vector<2x32xf32>
    %170 = arith.addf %169, %168 : vector<2x32xf32>
    %171 = arith.divf %169, %170 : vector<2x32xf32>
    %172 = arith.mulf %163, %117 : vector<2x32xf32>
    %173 = arith.mulf %157, %165 : vector<2x32xf32>
    %174 = arith.addf %172, %173 : vector<2x32xf32>
    %175 = math.tanh %174 : vector<2x32xf32>
    %176 = arith.mulf %171, %175 : vector<2x32xf32>
    %177 = tpu.concatenate %176, %148 in 1 : vector<2x32xf32>, vector<2x32xf32> -> vector<2x64xf32>
    %cst_41 = arith.constant dense<0.000000e+00> : vector<2x128xf32>
    %178 = tpu.matmul %177, %5, %cst_41 {dimension_numbers = #tpu.dot_dimension_numbers<[1], [0], [0], [1], [0, 0, 1, 1], [], []>} : vector<2x64xf32>, vector<64x128xf32>, vector<2x128xf32> -> vector<2x128xf32>
    %179 = vector.broadcast %6 : vector<1x128xf32> to vector<2x128xf32>
    %180 = arith.addf %178, %179 : vector<2x128xf32>
    %181 = vector.extract_strided_slice %180 {offsets = [0, 0], sizes = [2, 32], strides = [1, 1]} : vector<2x128xf32> to vector<2x32xf32>
    %182 = arith.negf %181 : vector<2x32xf32>
    %183 = math.exp %182 : vector<2x32xf32>
    %cst_42 = arith.constant 1.000000e+00 : f32
    %184 = vector.broadcast %cst_42 : f32 to vector<2x32xf32>
    %185 = arith.addf %184, %183 : vector<2x32xf32>
    %186 = arith.divf %184, %185 : vector<2x32xf32>
    %187 = vector.extract_strided_slice %180 {offsets = [0, 32], sizes = [2, 32], strides = [1, 1]} : vector<2x128xf32> to vector<2x32xf32>
    %188 = arith.negf %187 : vector<2x32xf32>
    %189 = math.exp %188 : vector<2x32xf32>
    %cst_43 = arith.constant 1.000000e+00 : f32
    %190 = vector.broadcast %cst_43 : f32 to vector<2x32xf32>
    %191 = arith.addf %190, %189 : vector<2x32xf32>
    %192 = arith.divf %190, %191 : vector<2x32xf32>
    %193 = vector.extract_strided_slice %180 {offsets = [0, 64], sizes = [2, 32], strides = [1, 1]} : vector<2x128xf32> to vector<2x32xf32>
    %194 = math.tanh %193 : vector<2x32xf32>
    %195 = vector.extract_strided_slice %180 {offsets = [0, 96], sizes = [2, 32], strides = [1, 1]} : vector<2x128xf32> to vector<2x32xf32>
    %196 = arith.negf %195 : vector<2x32xf32>
    %197 = math.exp %196 : vector<2x32xf32>
    %cst_44 = arith.constant 1.000000e+00 : f32
    %198 = vector.broadcast %cst_44 : f32 to vector<2x32xf32>
    %199 = arith.addf %198, %197 : vector<2x32xf32>
    %200 = arith.divf %198, %199 : vector<2x32xf32>
    %201 = arith.mulf %192, %146 : vector<2x32xf32>
    %202 = arith.mulf %186, %194 : vector<2x32xf32>
    %203 = arith.addf %201, %202 : vector<2x32xf32>
    %204 = math.tanh %203 : vector<2x32xf32>
    %205 = arith.mulf %200, %204 : vector<2x32xf32>
    %206 = vector.extract_strided_slice %30 {offsets = [6, 0], sizes = [2, 128], strides = [1, 1]} : vector<16x128xf32> to vector<2x128xf32>
    %cst_45 = arith.constant dense<0.000000e+00> : vector<2x128xf32>
    %207 = tpu.matmul %176, %3, %cst_45 {dimension_numbers = #tpu.dot_dimension_numbers<[1], [0], [0], [1], [0, 0, 1, 1], [], []>} : vector<2x32xf32>, vector<32x128xf32>, vector<2x128xf32> -> vector<2x128xf32>
    %208 = arith.addf %206, %207 : vector<2x128xf32>
    %209 = vector.extract_strided_slice %208 {offsets = [0, 0], sizes = [2, 32], strides = [1, 1]} : vector<2x128xf32> to vector<2x32xf32>
    %210 = arith.negf %209 : vector<2x32xf32>
    %211 = math.exp %210 : vector<2x32xf32>
    %cst_46 = arith.constant 1.000000e+00 : f32
    %212 = vector.broadcast %cst_46 : f32 to vector<2x32xf32>
    %213 = arith.addf %212, %211 : vector<2x32xf32>
    %214 = arith.divf %212, %213 : vector<2x32xf32>
    %215 = vector.extract_strided_slice %208 {offsets = [0, 32], sizes = [2, 32], strides = [1, 1]} : vector<2x128xf32> to vector<2x32xf32>
    %216 = arith.negf %215 : vector<2x32xf32>
    %217 = math.exp %216 : vector<2x32xf32>
    %cst_47 = arith.constant 1.000000e+00 : f32
    %218 = vector.broadcast %cst_47 : f32 to vector<2x32xf32>
    %219 = arith.addf %218, %217 : vector<2x32xf32>
    %220 = arith.divf %218, %219 : vector<2x32xf32>
    %221 = vector.extract_strided_slice %208 {offsets = [0, 64], sizes = [2, 32], strides = [1, 1]} : vector<2x128xf32> to vector<2x32xf32>
    %222 = math.tanh %221 : vector<2x32xf32>
    %223 = vector.extract_strided_slice %208 {offsets = [0, 96], sizes = [2, 32], strides = [1, 1]} : vector<2x128xf32> to vector<2x32xf32>
    %224 = arith.negf %223 : vector<2x32xf32>
    %225 = math.exp %224 : vector<2x32xf32>
    %cst_48 = arith.constant 1.000000e+00 : f32
    %226 = vector.broadcast %cst_48 : f32 to vector<2x32xf32>
    %227 = arith.addf %226, %225 : vector<2x32xf32>
    %228 = arith.divf %226, %227 : vector<2x32xf32>
    %229 = arith.mulf %220, %174 : vector<2x32xf32>
    %230 = arith.mulf %214, %222 : vector<2x32xf32>
    %231 = arith.addf %229, %230 : vector<2x32xf32>
    %232 = math.tanh %231 : vector<2x32xf32>
    %233 = arith.mulf %228, %232 : vector<2x32xf32>
    %234 = tpu.concatenate %233, %205 in 1 : vector<2x32xf32>, vector<2x32xf32> -> vector<2x64xf32>
    %cst_49 = arith.constant dense<0.000000e+00> : vector<2x128xf32>
    %235 = tpu.matmul %234, %5, %cst_49 {dimension_numbers = #tpu.dot_dimension_numbers<[1], [0], [0], [1], [0, 0, 1, 1], [], []>} : vector<2x64xf32>, vector<64x128xf32>, vector<2x128xf32> -> vector<2x128xf32>
    %236 = vector.broadcast %6 : vector<1x128xf32> to vector<2x128xf32>
    %237 = arith.addf %235, %236 : vector<2x128xf32>
    %238 = vector.extract_strided_slice %237 {offsets = [0, 0], sizes = [2, 32], strides = [1, 1]} : vector<2x128xf32> to vector<2x32xf32>
    %239 = arith.negf %238 : vector<2x32xf32>
    %240 = math.exp %239 : vector<2x32xf32>
    %cst_50 = arith.constant 1.000000e+00 : f32
    %241 = vector.broadcast %cst_50 : f32 to vector<2x32xf32>
    %242 = arith.addf %241, %240 : vector<2x32xf32>
    %243 = arith.divf %241, %242 : vector<2x32xf32>
    %244 = vector.extract_strided_slice %237 {offsets = [0, 32], sizes = [2, 32], strides = [1, 1]} : vector<2x128xf32> to vector<2x32xf32>
    %245 = arith.negf %244 : vector<2x32xf32>
    %246 = math.exp %245 : vector<2x32xf32>
    %cst_51 = arith.constant 1.000000e+00 : f32
    %247 = vector.broadcast %cst_51 : f32 to vector<2x32xf32>
    %248 = arith.addf %247, %246 : vector<2x32xf32>
    %249 = arith.divf %247, %248 : vector<2x32xf32>
    %250 = vector.extract_strided_slice %237 {offsets = [0, 64], sizes = [2, 32], strides = [1, 1]} : vector<2x128xf32> to vector<2x32xf32>
    %251 = math.tanh %250 : vector<2x32xf32>
    %252 = vector.extract_strided_slice %237 {offsets = [0, 96], sizes = [2, 32], strides = [1, 1]} : vector<2x128xf32> to vector<2x32xf32>
    %253 = arith.negf %252 : vector<2x32xf32>
    %254 = math.exp %253 : vector<2x32xf32>
    %cst_52 = arith.constant 1.000000e+00 : f32
    %255 = vector.broadcast %cst_52 : f32 to vector<2x32xf32>
    %256 = arith.addf %255, %254 : vector<2x32xf32>
    %257 = arith.divf %255, %256 : vector<2x32xf32>
    %258 = arith.mulf %249, %203 : vector<2x32xf32>
    %259 = arith.mulf %243, %251 : vector<2x32xf32>
    %260 = arith.addf %258, %259 : vector<2x32xf32>
    %261 = math.tanh %260 : vector<2x32xf32>
    %262 = arith.mulf %257, %261 : vector<2x32xf32>
    %263 = vector.extract_strided_slice %30 {offsets = [8, 0], sizes = [2, 128], strides = [1, 1]} : vector<16x128xf32> to vector<2x128xf32>
    %cst_53 = arith.constant dense<0.000000e+00> : vector<2x128xf32>
    %264 = tpu.matmul %233, %3, %cst_53 {dimension_numbers = #tpu.dot_dimension_numbers<[1], [0], [0], [1], [0, 0, 1, 1], [], []>} : vector<2x32xf32>, vector<32x128xf32>, vector<2x128xf32> -> vector<2x128xf32>
    %265 = arith.addf %263, %264 : vector<2x128xf32>
    %266 = vector.extract_strided_slice %265 {offsets = [0, 0], sizes = [2, 32], strides = [1, 1]} : vector<2x128xf32> to vector<2x32xf32>
    %267 = arith.negf %266 : vector<2x32xf32>
    %268 = math.exp %267 : vector<2x32xf32>
    %cst_54 = arith.constant 1.000000e+00 : f32
    %269 = vector.broadcast %cst_54 : f32 to vector<2x32xf32>
    %270 = arith.addf %269, %268 : vector<2x32xf32>
    %271 = arith.divf %269, %270 : vector<2x32xf32>
    %272 = vector.extract_strided_slice %265 {offsets = [0, 32], sizes = [2, 32], strides = [1, 1]} : vector<2x128xf32> to vector<2x32xf32>
    %273 = arith.negf %272 : vector<2x32xf32>
    %274 = math.exp %273 : vector<2x32xf32>
    %cst_55 = arith.constant 1.000000e+00 : f32
    %275 = vector.broadcast %cst_55 : f32 to vector<2x32xf32>
    %276 = arith.addf %275, %274 : vector<2x32xf32>
    %277 = arith.divf %275, %276 : vector<2x32xf32>
    %278 = vector.extract_strided_slice %265 {offsets = [0, 64], sizes = [2, 32], strides = [1, 1]} : vector<2x128xf32> to vector<2x32xf32>
    %279 = math.tanh %278 : vector<2x32xf32>
    %280 = vector.extract_strided_slice %265 {offsets = [0, 96], sizes = [2, 32], strides = [1, 1]} : vector<2x128xf32> to vector<2x32xf32>
    %281 = arith.negf %280 : vector<2x32xf32>
    %282 = math.exp %281 : vector<2x32xf32>
    %cst_56 = arith.constant 1.000000e+00 : f32
    %283 = vector.broadcast %cst_56 : f32 to vector<2x32xf32>
    %284 = arith.addf %283, %282 : vector<2x32xf32>
    %285 = arith.divf %283, %284 : vector<2x32xf32>
    %286 = arith.mulf %277, %231 : vector<2x32xf32>
    %287 = arith.mulf %271, %279 : vector<2x32xf32>
    %288 = arith.addf %286, %287 : vector<2x32xf32>
    %289 = math.tanh %288 : vector<2x32xf32>
    %290 = arith.mulf %285, %289 : vector<2x32xf32>
    %291 = tpu.concatenate %290, %262 in 1 : vector<2x32xf32>, vector<2x32xf32> -> vector<2x64xf32>
    %cst_57 = arith.constant dense<0.000000e+00> : vector<2x128xf32>
    %292 = tpu.matmul %291, %5, %cst_57 {dimension_numbers = #tpu.dot_dimension_numbers<[1], [0], [0], [1], [0, 0, 1, 1], [], []>} : vector<2x64xf32>, vector<64x128xf32>, vector<2x128xf32> -> vector<2x128xf32>
    %293 = vector.broadcast %6 : vector<1x128xf32> to vector<2x128xf32>
    %294 = arith.addf %292, %293 : vector<2x128xf32>
    %295 = vector.extract_strided_slice %294 {offsets = [0, 0], sizes = [2, 32], strides = [1, 1]} : vector<2x128xf32> to vector<2x32xf32>
    %296 = arith.negf %295 : vector<2x32xf32>
    %297 = math.exp %296 : vector<2x32xf32>
    %cst_58 = arith.constant 1.000000e+00 : f32
    %298 = vector.broadcast %cst_58 : f32 to vector<2x32xf32>
    %299 = arith.addf %298, %297 : vector<2x32xf32>
    %300 = arith.divf %298, %299 : vector<2x32xf32>
    %301 = vector.extract_strided_slice %294 {offsets = [0, 32], sizes = [2, 32], strides = [1, 1]} : vector<2x128xf32> to vector<2x32xf32>
    %302 = arith.negf %301 : vector<2x32xf32>
    %303 = math.exp %302 : vector<2x32xf32>
    %cst_59 = arith.constant 1.000000e+00 : f32
    %304 = vector.broadcast %cst_59 : f32 to vector<2x32xf32>
    %305 = arith.addf %304, %303 : vector<2x32xf32>
    %306 = arith.divf %304, %305 : vector<2x32xf32>
    %307 = vector.extract_strided_slice %294 {offsets = [0, 64], sizes = [2, 32], strides = [1, 1]} : vector<2x128xf32> to vector<2x32xf32>
    %308 = math.tanh %307 : vector<2x32xf32>
    %309 = vector.extract_strided_slice %294 {offsets = [0, 96], sizes = [2, 32], strides = [1, 1]} : vector<2x128xf32> to vector<2x32xf32>
    %310 = arith.negf %309 : vector<2x32xf32>
    %311 = math.exp %310 : vector<2x32xf32>
    %cst_60 = arith.constant 1.000000e+00 : f32
    %312 = vector.broadcast %cst_60 : f32 to vector<2x32xf32>
    %313 = arith.addf %312, %311 : vector<2x32xf32>
    %314 = arith.divf %312, %313 : vector<2x32xf32>
    %315 = arith.mulf %306, %260 : vector<2x32xf32>
    %316 = arith.mulf %300, %308 : vector<2x32xf32>
    %317 = arith.addf %315, %316 : vector<2x32xf32>
    %318 = math.tanh %317 : vector<2x32xf32>
    %319 = arith.mulf %314, %318 : vector<2x32xf32>
    %320 = vector.extract_strided_slice %30 {offsets = [10, 0], sizes = [2, 128], strides = [1, 1]} : vector<16x128xf32> to vector<2x128xf32>
    %cst_61 = arith.constant dense<0.000000e+00> : vector<2x128xf32>
    %321 = tpu.matmul %290, %3, %cst_61 {dimension_numbers = #tpu.dot_dimension_numbers<[1], [0], [0], [1], [0, 0, 1, 1], [], []>} : vector<2x32xf32>, vector<32x128xf32>, vector<2x128xf32> -> vector<2x128xf32>
    %322 = arith.addf %320, %321 : vector<2x128xf32>
    %323 = vector.extract_strided_slice %322 {offsets = [0, 0], sizes = [2, 32], strides = [1, 1]} : vector<2x128xf32> to vector<2x32xf32>
    %324 = arith.negf %323 : vector<2x32xf32>
    %325 = math.exp %324 : vector<2x32xf32>
    %cst_62 = arith.constant 1.000000e+00 : f32
    %326 = vector.broadcast %cst_62 : f32 to vector<2x32xf32>
    %327 = arith.addf %326, %325 : vector<2x32xf32>
    %328 = arith.divf %326, %327 : vector<2x32xf32>
    %329 = vector.extract_strided_slice %322 {offsets = [0, 32], sizes = [2, 32], strides = [1, 1]} : vector<2x128xf32> to vector<2x32xf32>
    %330 = arith.negf %329 : vector<2x32xf32>
    %331 = math.exp %330 : vector<2x32xf32>
    %cst_63 = arith.constant 1.000000e+00 : f32
    %332 = vector.broadcast %cst_63 : f32 to vector<2x32xf32>
    %333 = arith.addf %332, %331 : vector<2x32xf32>
    %334 = arith.divf %332, %333 : vector<2x32xf32>
    %335 = vector.extract_strided_slice %322 {offsets = [0, 64], sizes = [2, 32], strides = [1, 1]} : vector<2x128xf32> to vector<2x32xf32>
    %336 = math.tanh %335 : vector<2x32xf32>
    %337 = vector.extract_strided_slice %322 {offsets = [0, 96], sizes = [2, 32], strides = [1, 1]} : vector<2x128xf32> to vector<2x32xf32>
    %338 = arith.negf %337 : vector<2x32xf32>
    %339 = math.exp %338 : vector<2x32xf32>
    %cst_64 = arith.constant 1.000000e+00 : f32
    %340 = vector.broadcast %cst_64 : f32 to vector<2x32xf32>
    %341 = arith.addf %340, %339 : vector<2x32xf32>
    %342 = arith.divf %340, %341 : vector<2x32xf32>
    %343 = arith.mulf %334, %288 : vector<2x32xf32>
    %344 = arith.mulf %328, %336 : vector<2x32xf32>
    %345 = arith.addf %343, %344 : vector<2x32xf32>
    %346 = math.tanh %345 : vector<2x32xf32>
    %347 = arith.mulf %342, %346 : vector<2x32xf32>
    %348 = tpu.concatenate %347, %319 in 1 : vector<2x32xf32>, vector<2x32xf32> -> vector<2x64xf32>
    %cst_65 = arith.constant dense<0.000000e+00> : vector<2x128xf32>
    %349 = tpu.matmul %348, %5, %cst_65 {dimension_numbers = #tpu.dot_dimension_numbers<[1], [0], [0], [1], [0, 0, 1, 1], [], []>} : vector<2x64xf32>, vector<64x128xf32>, vector<2x128xf32> -> vector<2x128xf32>
    %350 = vector.broadcast %6 : vector<1x128xf32> to vector<2x128xf32>
    %351 = arith.addf %349, %350 : vector<2x128xf32>
    %352 = vector.extract_strided_slice %351 {offsets = [0, 0], sizes = [2, 32], strides = [1, 1]} : vector<2x128xf32> to vector<2x32xf32>
    %353 = arith.negf %352 : vector<2x32xf32>
    %354 = math.exp %353 : vector<2x32xf32>
    %cst_66 = arith.constant 1.000000e+00 : f32
    %355 = vector.broadcast %cst_66 : f32 to vector<2x32xf32>
    %356 = arith.addf %355, %354 : vector<2x32xf32>
    %357 = arith.divf %355, %356 : vector<2x32xf32>
    %358 = vector.extract_strided_slice %351 {offsets = [0, 32], sizes = [2, 32], strides = [1, 1]} : vector<2x128xf32> to vector<2x32xf32>
    %359 = arith.negf %358 : vector<2x32xf32>
    %360 = math.exp %359 : vector<2x32xf32>
    %cst_67 = arith.constant 1.000000e+00 : f32
    %361 = vector.broadcast %cst_67 : f32 to vector<2x32xf32>
    %362 = arith.addf %361, %360 : vector<2x32xf32>
    %363 = arith.divf %361, %362 : vector<2x32xf32>
    %364 = vector.extract_strided_slice %351 {offsets = [0, 64], sizes = [2, 32], strides = [1, 1]} : vector<2x128xf32> to vector<2x32xf32>
    %365 = math.tanh %364 : vector<2x32xf32>
    %366 = vector.extract_strided_slice %351 {offsets = [0, 96], sizes = [2, 32], strides = [1, 1]} : vector<2x128xf32> to vector<2x32xf32>
    %367 = arith.negf %366 : vector<2x32xf32>
    %368 = math.exp %367 : vector<2x32xf32>
    %cst_68 = arith.constant 1.000000e+00 : f32
    %369 = vector.broadcast %cst_68 : f32 to vector<2x32xf32>
    %370 = arith.addf %369, %368 : vector<2x32xf32>
    %371 = arith.divf %369, %370 : vector<2x32xf32>
    %372 = arith.mulf %363, %317 : vector<2x32xf32>
    %373 = arith.mulf %357, %365 : vector<2x32xf32>
    %374 = arith.addf %372, %373 : vector<2x32xf32>
    %375 = math.tanh %374 : vector<2x32xf32>
    %376 = arith.mulf %371, %375 : vector<2x32xf32>
    %377 = vector.extract_strided_slice %30 {offsets = [12, 0], sizes = [2, 128], strides = [1, 1]} : vector<16x128xf32> to vector<2x128xf32>
    %cst_69 = arith.constant dense<0.000000e+00> : vector<2x128xf32>
    %378 = tpu.matmul %347, %3, %cst_69 {dimension_numbers = #tpu.dot_dimension_numbers<[1], [0], [0], [1], [0, 0, 1, 1], [], []>} : vector<2x32xf32>, vector<32x128xf32>, vector<2x128xf32> -> vector<2x128xf32>
    %379 = arith.addf %377, %378 : vector<2x128xf32>
    %380 = vector.extract_strided_slice %379 {offsets = [0, 0], sizes = [2, 32], strides = [1, 1]} : vector<2x128xf32> to vector<2x32xf32>
    %381 = arith.negf %380 : vector<2x32xf32>
    %382 = math.exp %381 : vector<2x32xf32>
    %cst_70 = arith.constant 1.000000e+00 : f32
    %383 = vector.broadcast %cst_70 : f32 to vector<2x32xf32>
    %384 = arith.addf %383, %382 : vector<2x32xf32>
    %385 = arith.divf %383, %384 : vector<2x32xf32>
    %386 = vector.extract_strided_slice %379 {offsets = [0, 32], sizes = [2, 32], strides = [1, 1]} : vector<2x128xf32> to vector<2x32xf32>
    %387 = arith.negf %386 : vector<2x32xf32>
    %388 = math.exp %387 : vector<2x32xf32>
    %cst_71 = arith.constant 1.000000e+00 : f32
    %389 = vector.broadcast %cst_71 : f32 to vector<2x32xf32>
    %390 = arith.addf %389, %388 : vector<2x32xf32>
    %391 = arith.divf %389, %390 : vector<2x32xf32>
    %392 = vector.extract_strided_slice %379 {offsets = [0, 64], sizes = [2, 32], strides = [1, 1]} : vector<2x128xf32> to vector<2x32xf32>
    %393 = math.tanh %392 : vector<2x32xf32>
    %394 = vector.extract_strided_slice %379 {offsets = [0, 96], sizes = [2, 32], strides = [1, 1]} : vector<2x128xf32> to vector<2x32xf32>
    %395 = arith.negf %394 : vector<2x32xf32>
    %396 = math.exp %395 : vector<2x32xf32>
    %cst_72 = arith.constant 1.000000e+00 : f32
    %397 = vector.broadcast %cst_72 : f32 to vector<2x32xf32>
    %398 = arith.addf %397, %396 : vector<2x32xf32>
    %399 = arith.divf %397, %398 : vector<2x32xf32>
    %400 = arith.mulf %391, %345 : vector<2x32xf32>
    %401 = arith.mulf %385, %393 : vector<2x32xf32>
    %402 = arith.addf %400, %401 : vector<2x32xf32>
    %403 = math.tanh %402 : vector<2x32xf32>
    %404 = arith.mulf %399, %403 : vector<2x32xf32>
    %405 = tpu.concatenate %404, %376 in 1 : vector<2x32xf32>, vector<2x32xf32> -> vector<2x64xf32>
    %cst_73 = arith.constant dense<0.000000e+00> : vector<2x128xf32>
    %406 = tpu.matmul %405, %5, %cst_73 {dimension_numbers = #tpu.dot_dimension_numbers<[1], [0], [0], [1], [0, 0, 1, 1], [], []>} : vector<2x64xf32>, vector<64x128xf32>, vector<2x128xf32> -> vector<2x128xf32>
    %407 = vector.broadcast %6 : vector<1x128xf32> to vector<2x128xf32>
    %408 = arith.addf %406, %407 : vector<2x128xf32>
    %409 = vector.extract_strided_slice %408 {offsets = [0, 0], sizes = [2, 32], strides = [1, 1]} : vector<2x128xf32> to vector<2x32xf32>
    %410 = arith.negf %409 : vector<2x32xf32>
    %411 = math.exp %410 : vector<2x32xf32>
    %cst_74 = arith.constant 1.000000e+00 : f32
    %412 = vector.broadcast %cst_74 : f32 to vector<2x32xf32>
    %413 = arith.addf %412, %411 : vector<2x32xf32>
    %414 = arith.divf %412, %413 : vector<2x32xf32>
    %415 = vector.extract_strided_slice %408 {offsets = [0, 32], sizes = [2, 32], strides = [1, 1]} : vector<2x128xf32> to vector<2x32xf32>
    %416 = arith.negf %415 : vector<2x32xf32>
    %417 = math.exp %416 : vector<2x32xf32>
    %cst_75 = arith.constant 1.000000e+00 : f32
    %418 = vector.broadcast %cst_75 : f32 to vector<2x32xf32>
    %419 = arith.addf %418, %417 : vector<2x32xf32>
    %420 = arith.divf %418, %419 : vector<2x32xf32>
    %421 = vector.extract_strided_slice %408 {offsets = [0, 64], sizes = [2, 32], strides = [1, 1]} : vector<2x128xf32> to vector<2x32xf32>
    %422 = math.tanh %421 : vector<2x32xf32>
    %423 = vector.extract_strided_slice %408 {offsets = [0, 96], sizes = [2, 32], strides = [1, 1]} : vector<2x128xf32> to vector<2x32xf32>
    %424 = arith.negf %423 : vector<2x32xf32>
    %425 = math.exp %424 : vector<2x32xf32>
    %cst_76 = arith.constant 1.000000e+00 : f32
    %426 = vector.broadcast %cst_76 : f32 to vector<2x32xf32>
    %427 = arith.addf %426, %425 : vector<2x32xf32>
    %428 = arith.divf %426, %427 : vector<2x32xf32>
    %429 = arith.mulf %420, %374 : vector<2x32xf32>
    %430 = arith.mulf %414, %422 : vector<2x32xf32>
    %431 = arith.addf %429, %430 : vector<2x32xf32>
    %432 = math.tanh %431 : vector<2x32xf32>
    %433 = arith.mulf %428, %432 : vector<2x32xf32>
    %434 = vector.extract_strided_slice %30 {offsets = [14, 0], sizes = [2, 128], strides = [1, 1]} : vector<16x128xf32> to vector<2x128xf32>
    %cst_77 = arith.constant dense<0.000000e+00> : vector<2x128xf32>
    %435 = tpu.matmul %404, %3, %cst_77 {dimension_numbers = #tpu.dot_dimension_numbers<[1], [0], [0], [1], [0, 0, 1, 1], [], []>} : vector<2x32xf32>, vector<32x128xf32>, vector<2x128xf32> -> vector<2x128xf32>
    %436 = arith.addf %434, %435 : vector<2x128xf32>
    %437 = vector.extract_strided_slice %436 {offsets = [0, 0], sizes = [2, 32], strides = [1, 1]} : vector<2x128xf32> to vector<2x32xf32>
    %438 = arith.negf %437 : vector<2x32xf32>
    %439 = math.exp %438 : vector<2x32xf32>
    %cst_78 = arith.constant 1.000000e+00 : f32
    %440 = vector.broadcast %cst_78 : f32 to vector<2x32xf32>
    %441 = arith.addf %440, %439 : vector<2x32xf32>
    %442 = arith.divf %440, %441 : vector<2x32xf32>
    %443 = vector.extract_strided_slice %436 {offsets = [0, 32], sizes = [2, 32], strides = [1, 1]} : vector<2x128xf32> to vector<2x32xf32>
    %444 = arith.negf %443 : vector<2x32xf32>
    %445 = math.exp %444 : vector<2x32xf32>
    %cst_79 = arith.constant 1.000000e+00 : f32
    %446 = vector.broadcast %cst_79 : f32 to vector<2x32xf32>
    %447 = arith.addf %446, %445 : vector<2x32xf32>
    %448 = arith.divf %446, %447 : vector<2x32xf32>
    %449 = vector.extract_strided_slice %436 {offsets = [0, 64], sizes = [2, 32], strides = [1, 1]} : vector<2x128xf32> to vector<2x32xf32>
    %450 = math.tanh %449 : vector<2x32xf32>
    %451 = vector.extract_strided_slice %436 {offsets = [0, 96], sizes = [2, 32], strides = [1, 1]} : vector<2x128xf32> to vector<2x32xf32>
    %452 = arith.negf %451 : vector<2x32xf32>
    %453 = math.exp %452 : vector<2x32xf32>
    %cst_80 = arith.constant 1.000000e+00 : f32
    %454 = vector.broadcast %cst_80 : f32 to vector<2x32xf32>
    %455 = arith.addf %454, %453 : vector<2x32xf32>
    %456 = arith.divf %454, %455 : vector<2x32xf32>
    %457 = arith.mulf %448, %402 : vector<2x32xf32>
    %458 = arith.mulf %442, %450 : vector<2x32xf32>
    %459 = arith.addf %457, %458 : vector<2x32xf32>
    %460 = math.tanh %459 : vector<2x32xf32>
    %461 = arith.mulf %456, %460 : vector<2x32xf32>
    %462 = tpu.concatenate %461, %433 in 1 : vector<2x32xf32>, vector<2x32xf32> -> vector<2x64xf32>
    %cst_81 = arith.constant dense<0.000000e+00> : vector<2x128xf32>
    %463 = tpu.matmul %462, %5, %cst_81 {dimension_numbers = #tpu.dot_dimension_numbers<[1], [0], [0], [1], [0, 0, 1, 1], [], []>} : vector<2x64xf32>, vector<64x128xf32>, vector<2x128xf32> -> vector<2x128xf32>
    %464 = vector.broadcast %6 : vector<1x128xf32> to vector<2x128xf32>
    %465 = arith.addf %463, %464 : vector<2x128xf32>
    %466 = vector.extract_strided_slice %465 {offsets = [0, 0], sizes = [2, 32], strides = [1, 1]} : vector<2x128xf32> to vector<2x32xf32>
    %467 = arith.negf %466 : vector<2x32xf32>
    %468 = math.exp %467 : vector<2x32xf32>
    %cst_82 = arith.constant 1.000000e+00 : f32
    %469 = vector.broadcast %cst_82 : f32 to vector<2x32xf32>
    %470 = arith.addf %469, %468 : vector<2x32xf32>
    %471 = arith.divf %469, %470 : vector<2x32xf32>
    %472 = vector.extract_strided_slice %465 {offsets = [0, 32], sizes = [2, 32], strides = [1, 1]} : vector<2x128xf32> to vector<2x32xf32>
    %473 = arith.negf %472 : vector<2x32xf32>
    %474 = math.exp %473 : vector<2x32xf32>
    %cst_83 = arith.constant 1.000000e+00 : f32
    %475 = vector.broadcast %cst_83 : f32 to vector<2x32xf32>
    %476 = arith.addf %475, %474 : vector<2x32xf32>
    %477 = arith.divf %475, %476 : vector<2x32xf32>
    %478 = vector.extract_strided_slice %465 {offsets = [0, 64], sizes = [2, 32], strides = [1, 1]} : vector<2x128xf32> to vector<2x32xf32>
    %479 = math.tanh %478 : vector<2x32xf32>
    %480 = vector.extract_strided_slice %465 {offsets = [0, 96], sizes = [2, 32], strides = [1, 1]} : vector<2x128xf32> to vector<2x32xf32>
    %481 = arith.negf %480 : vector<2x32xf32>
    %482 = math.exp %481 : vector<2x32xf32>
    %cst_84 = arith.constant 1.000000e+00 : f32
    %483 = vector.broadcast %cst_84 : f32 to vector<2x32xf32>
    %484 = arith.addf %483, %482 : vector<2x32xf32>
    %485 = arith.divf %483, %484 : vector<2x32xf32>
    %486 = arith.mulf %477, %431 : vector<2x32xf32>
    %487 = arith.mulf %471, %479 : vector<2x32xf32>
    %488 = arith.addf %486, %487 : vector<2x32xf32>
    %489 = math.tanh %488 : vector<2x32xf32>
    %490 = arith.mulf %485, %489 : vector<2x32xf32>
    %c0_85 = arith.constant 0 : index
    %c0_86 = arith.constant 0 : index
    %491 = vector.load %arg9[%c0_85, %c0_86] : memref<32x4xf32, #tpu.memory_space<vmem>>, vector<32x4xf32>
    %cst_87 = arith.constant dense<0.000000e+00> : vector<2x4xf32>
    %492 = tpu.matmul %490, %491, %cst_87 {dimension_numbers = #tpu.dot_dimension_numbers<[1], [0], [0], [1], [0, 0, 1, 1], [], []>} : vector<2x32xf32>, vector<32x4xf32>, vector<2x4xf32> -> vector<2x4xf32>
    %c0_88 = arith.constant 0 : index
    %c0_89 = arith.constant 0 : index
    %493 = vector.load %arg10[%c0_88, %c0_89] : memref<1x4xf32, #tpu.memory_space<vmem>>, vector<1x4xf32>
    %494 = vector.broadcast %493 : vector<1x4xf32> to vector<2x4xf32>
    %495 = arith.addf %492, %494 : vector<2x4xf32>
    %c0_90 = arith.constant 0 : index
    %c0_91 = arith.constant 0 : index
    %496 = vector.load %arg11[%c0_90, %c0_91] : memref<2x4xf32, #tpu.memory_space<vmem>>, vector<2x4xf32>
    tpu.vector_store %arg11[%c0_90, %c0_91], %495 {strides = array<i32>} : memref<2x4xf32, #tpu.memory_space<vmem>>, vector<2x4xf32>,
    return
  }
  func.func @transform_0(%arg0: i32) -> (i32, i32) {
    %c0_i32 = arith.constant 0 : i32
    %c0_i32_0 = arith.constant 0 : i32
    %c0_i32_1 = arith.constant 0 : i32
    return %c0_i32, %c0_i32_0 : i32, i32
  }
  func.func @transform_1(%arg0: i32) -> (i32, i32) {
    %c0_i32 = arith.constant 0 : i32
    %c0_i32_0 = arith.constant 0 : i32
    %c0_i32_1 = arith.constant 0 : i32
    return %c0_i32, %c0_i32_0 : i32, i32
  }
  func.func @transform_2(%arg0: i32) -> (i32, i32) {
    %c0_i32 = arith.constant 0 : i32
    %c0_i32_0 = arith.constant 0 : i32
    %c0_i32_1 = arith.constant 0 : i32
    return %c0_i32, %c0_i32_0 : i32, i32
  }
  func.func @transform_3(%arg0: i32) -> (i32, i32) {
    %c0_i32 = arith.constant 0 : i32
    %c0_i32_0 = arith.constant 0 : i32
    %c0_i32_1 = arith.constant 0 : i32
    return %c0_i32, %c0_i32_0 : i32, i32
  }
  func.func @transform_4(%arg0: i32) -> (i32, i32) {
    %c0_i32 = arith.constant 0 : i32
    %c0_i32_0 = arith.constant 0 : i32
    %c0_i32_1 = arith.constant 0 : i32
    return %c0_i32, %c0_i32_0 : i32, i32
  }
  func.func @transform_5(%arg0: i32) -> (i32, i32) {
    %c0_i32 = arith.constant 0 : i32
    %c0_i32_0 = arith.constant 0 : i32
    %c0_i32_1 = arith.constant 0 : i32
    return %c0_i32, %c0_i32_0 : i32, i32
  }
  func.func @transform_6(%arg0: i32) -> (i32, i32) {
    %c0_i32 = arith.constant 0 : i32
    %c0_i32_0 = arith.constant 0 : i32
    %c0_i32_1 = arith.constant 0 : i32
    return %c0_i32, %c0_i32_0 : i32, i32
  }
  func.func @transform_7(%arg0: i32) -> (i32, i32) {
    %c0_i32 = arith.constant 0 : i32
    %c0_i32_0 = arith.constant 0 : i32
    %c0_i32_1 = arith.constant 0 : i32
    return %c0_i32, %c0_i32_0 : i32, i32
  }
  func.func @transform_8(%arg0: i32) -> (i32, i32) {
    %c0_i32 = arith.constant 0 : i32
    %c0_i32_0 = arith.constant 0 : i32
    %c0_i32_1 = arith.constant 0 : i32
    return %c0_i32, %c0_i32_0 : i32, i32
  }
  func.func @transform_9(%arg0: i32) -> (i32, i32) {
    %c0_i32 = arith.constant 0 : i32
    %c0_i32_0 = arith.constant 0 : i32
    %c0_i32_1 = arith.constant 0 : i32
    return %c0_i32, %c0_i32_0 : i32, i32
  }
  func.func @transform_10(%arg0: i32) -> (i32, i32) {
    %c0_i32 = arith.constant 0 : i32
    %c0_i32_0 = arith.constant 0 : i32
    %c0_i32_1 = arith.constant 0 : i32
    return %c0_i32, %c0_i32_0 : i32, i32
  }
}

</mosaic_0001>

<llo_original>
// kernel: tpu_custom_call.1
$region0: #{tpu_custom_call.1}
  #allocation0 [shape = 'u32[]', space=smem, size = 0x4, offset = 0x4, fixed_abs, tag = 'smem constant byte address 0x4 - core index']
  #allocation1 [shape = 'u32[144,128]{1,0:T(1,128)}', space=vmem, size = 0x12000, scoped, tag = 'internal scratch']
  %s0 = inlined_call_operand.vmem [shape: f32[128,6], index: 0, kind: input, shape index: {}]
  %s1 = inlined_call_operand.vmem [shape: f32[6,32], index: 1, kind: input, shape index: {}]
  %s2 = inlined_call_operand.vmem [shape: f32[1,32], index: 2, kind: input, shape index: {}]
  %s3 = inlined_call_operand.vmem [shape: f32[32,128], index: 3, kind: input, shape index: {}]
  %s4 = inlined_call_operand.vmem [shape: f32[32,128], index: 4, kind: input, shape index: {}]
  %s5 = inlined_call_operand.vmem [shape: f32[1,128], index: 5, kind: input, shape index: {}]
  %s6 = inlined_call_operand.vmem [shape: f32[64,128], index: 6, kind: input, shape index: {}]
  %s7 = inlined_call_operand.vmem [shape: f32[1,128], index: 7, kind: input, shape index: {}]
  %s8 = inlined_call_operand.vmem [shape: f32[32,4], index: 8, kind: input, shape index: {}]
  %s9 = inlined_call_operand.vmem [shape: f32[1,4], index: 9, kind: input, shape index: {}]
  %s10 = inlined_call_operand.hbm [shape: f32[2,4], index: 10, kind: output, shape index: {}]
  %s11 = sld [smem:[#allocation0]]
  $region50: #{tpu_custom_call.1} parent=0
    _
  %s13 = ssub.s32 1, %s11
  %s14 = scalar_select 0, %s13, %s11
  $region1: #{tpu_custom_call.1} parent=0
    #allocation2 [shape = 'u8[1024]{0}', space=vmem, size = 0x400, scoped, tag = 'output window, operand 0, single buffered']
    #allocation3 [shape = 's32[1]{0}', space=sflag, size = 0x4, scoped, tag = 'scoped memory for tpu_custom_call.1']
    %15 = vsyncpa [#allocation3], 0
    // Predicated region
    $region2: #{tpu_custom_call.1} parent=1 // pred_check
      _
    $region3: #{tpu_custom_call.1} parent=1 // pred_check_branch
      %17 = sbr.rel (0) target = $region5
    $region4: #{tpu_custom_call.1} parent=1 // pred_region
      _
    $region5: #{tpu_custom_call.1} parent=1 // pred_fallthru
      _
    // Predicated region
    $region6: #{tpu_custom_call.1} parent=1 // pred_check
      _
    $region7: #{tpu_custom_call.1} parent=1 // pred_check_branch
      %19 = sbr.rel (0) target = $region9
    $region8: #{tpu_custom_call.1} parent=1 // pred_region
      _
    $region9: #{tpu_custom_call.1} parent=1 // pred_fallthru
      _
    // Predicated region
    $region10: #{tpu_custom_call.1} parent=1 // pred_check
      _
    $region11: #{tpu_custom_call.1} parent=1 // pred_check_branch
      %21 = sbr.rel (0) target = $region13
    $region12: #{tpu_custom_call.1} parent=1 // pred_region
      _
    $region13: #{tpu_custom_call.1} parent=1 // pred_fallthru
      _
    // Predicated region
    $region14: #{tpu_custom_call.1} parent=1 // pred_check
      _
    $region15: #{tpu_custom_call.1} parent=1 // pred_check_branch
      %23 = sbr.rel (0) target = $region17
    $region16: #{tpu_custom_call.1} parent=1 // pred_region
      _
    $region17: #{tpu_custom_call.1} parent=1 // pred_fallthru
      _
    // Predicated region
    $region18: #{tpu_custom_call.1} parent=1 // pred_check
      _
    $region19: #{tpu_custom_call.1} parent=1 // pred_check_branch
      %25 = sbr.rel (0) target = $region21
    $region20: #{tpu_custom_call.1} parent=1 // pred_region
      _
    $region21: #{tpu_custom_call.1} parent=1 // pred_fallthru
      _
    // Predicated region
    $region22: #{tpu_custom_call.1} parent=1 // pred_check
      _
    $region23: #{tpu_custom_call.1} parent=1 // pred_check_branch
      %27 = sbr.rel (0) target = $region25
    $region24: #{tpu_custom_call.1} parent=1 // pred_region
      _
    $region25: #{tpu_custom_call.1} parent=1 // pred_fallthru
      _
    // Predicated region
    $region26: #{tpu_custom_call.1} parent=1 // pred_check
      _
    $region27: #{tpu_custom_call.1} parent=1 // pred_check_branch
      %29 = sbr.rel (0) target = $region29
    $region28: #{tpu_custom_call.1} parent=1 // pred_region
      _
    $region29: #{tpu_custom_call.1} parent=1 // pred_fallthru
      _
    // Predicated region
    $region30: #{tpu_custom_call.1} parent=1 // pred_check
      _
    $region31: #{tpu_custom_call.1} parent=1 // pred_check_branch
      %31 = sbr.rel (0) target = $region33
    $region32: #{tpu_custom_call.1} parent=1 // pred_region
      _
    $region33: #{tpu_custom_call.1} parent=1 // pred_fallthru
      _
    // Predicated region
    $region34: #{tpu_custom_call.1} parent=1 // pred_check
      _
    $region35: #{tpu_custom_call.1} parent=1 // pred_check_branch
      %33 = sbr.rel (0) target = $region37
    $region36: #{tpu_custom_call.1} parent=1 // pred_region
      _
    $region37: #{tpu_custom_call.1} parent=1 // pred_fallthru
      _
    // Predicated region
    $region38: #{tpu_custom_call.1} parent=1 // pred_check
      _
    $region39: #{tpu_custom_call.1} parent=1 // pred_check_branch
      %35 = sbr.rel (0) target = $region41
    $region40: #{tpu_custom_call.1} parent=1 // pred_region
      _
    $region41: #{tpu_custom_call.1} parent=1 // pred_fallthru
      _
    %v36 = vld [vmem:[%s1] sm:$0x3f]
    %v37 = vld [vmem:[%s2] sm:$0x1]
    %v38 = vld [vmem:[%s3] sm:$0xff]
    %v39 = vld [vmem:[%s3 + $0x8] sm:$0xff]
    %v40 = vld [vmem:[%s3 + $0x10] sm:$0xff]
    %v41 = vld [vmem:[%s3 + $0x18] sm:$0xff]
    %v42 = vld [vmem:[%s4] sm:$0xff]
    %v43 = vld [vmem:[%s4 + $0x8] sm:$0xff]
    %v44 = vld [vmem:[%s4 + $0x10] sm:$0xff]
    %v45 = vld [vmem:[%s4 + $0x18] sm:$0xff]
    %v46 = vld [vmem:[%s5] sm:$0x1]
    %v47 = vld [vmem:[%s6] sm:$0xff]
    %v48 = vld [vmem:[%s6 + $0x8] sm:$0xff]
    %v49 = vld [vmem:[%s6 + $0x10] sm:$0xff]
    %v50 = vld [vmem:[%s6 + $0x18] sm:$0xff]
    %v51 = vld [vmem:[%s6 + $0x20] sm:$0xff]
    %v52 = vld [vmem:[%s6 + $0x28] sm:$0xff]
    %v53 = vld [vmem:[%s6 + $0x30] sm:$0xff]
    %v54 = vld [vmem:[%s6 + $0x38] sm:$0xff]
    %v55 = vld [vmem:[%s7] sm:$0x1]
    %v56 = vld [vmem:[%s0] sm:$0xff]
    %v57 = vld [vmem:[%s0 + $0x8] sm:$0xff]
    %v58 = vld [vmem:[%s0 + $0x10] sm:$0xff]
    %v59 = vld [vmem:[%s0 + $0x18] sm:$0xff]
    %v60 = vld [vmem:[%s0 + $0x20] sm:$0xff]
    %v61 = vld [vmem:[%s0 + $0x28] sm:$0xff]
    %v62 = vld [vmem:[%s0 + $0x30] sm:$0xff]
    %v63 = vld [vmem:[%s0 + $0x38] sm:$0xff]
    %v64 = vld [vmem:[%s0 + $0x40] sm:$0xff]
    %v65 = vld [vmem:[%s0 + $0x48] sm:$0xff]
    %v66 = vld [vmem:[%s0 + $0x50] sm:$0xff]
    %v67 = vld [vmem:[%s0 + $0x58] sm:$0xff]
    %v68 = vld [vmem:[%s0 + $0x60] sm:$0xff]
    %v69 = vld [vmem:[%s0 + $0x68] sm:$0xff]
    %v70 = vld [vmem:[%s0 + $0x70] sm:$0xff]
    %v71 = vld [vmem:[%s0 + $0x78] sm:$0xff]
    %v73 = vlaneseq
    %v74 = vshrl.u32 %v73, 7
    %v75 = vsub.s32 0, %v74
    %v76 = vrot.slane %v37, %v75
    %vm78 = vcmask 48128
    %v80 = vsel %vm78, %v56, 0
    %v83 = vsel %vm78, %v57, 0
    %v86 = vsel %vm78, %v58, 0
    %v89 = vsel %vm78, %v59, 0
    %v92 = vsel %vm78, %v60, 0
    %v95 = vsel %vm78, %v61, 0
    %v98 = vsel %vm78, %v62, 0
    %v101 = vsel %vm78, %v63, 0
    %v104 = vsel %vm78, %v64, 0
    %v107 = vsel %vm78, %v65, 0
    %v110 = vsel %vm78, %v66, 0
    %v113 = vsel %vm78, %v67, 0
    %v116 = vsel %vm78, %v68, 0
    %v119 = vsel %vm78, %v69, 0
    %v122 = vsel %vm78, %v70, 0
    %v125 = vsel %vm78, %v71, 0
    %vm127 = vcmask 1045504
    %v129 = vsel %vm127, %v36, 0
    %131 = vmatprep.subr.mxu0 0.0
    %132 = vmatpush1.msra.mxu0 %v129
    %133 = vmatprep.subr.mxu0 0.0
    %134 = vmatpush1.msra.mxu0 0.0
    %135 = vmatprep.subr.mxu0 0.0
    %136 = vmatpush1.msra.mxu0 0.0
    %137 = vmatprep.subr.mxu0 0.0
    %138 = vmatpush1.msra.mxu0 0.0
    %139 = vmatprep.subr.mxu0 0.0
    %140 = vmatpush1.msra.mxu0 0.0
    %141 = vmatprep.subr.mxu0 0.0
    %142 = vmatpush1.msra.mxu0 0.0
    %143 = vmatprep.subr.mxu0 0.0
    %144 = vmatpush1.msra.mxu0 0.0
    %145 = vmatprep.subr.mxu0 0.0
    %146 = vmatpush1.msra.mxu0 0.0
    %147 = vmatprep.subr.mxu0 0.0
    %148 = vmatpush1.msra.mxu0 0.0
    %149 = vmatprep.subr.mxu0 0.0
    %150 = vmatpush1.msra.mxu0 0.0
    %151 = vmatprep.subr.mxu0 0.0
    %152 = vmatpush1.msra.mxu0 0.0
    %153 = vmatprep.subr.mxu0 0.0
    %154 = vmatpush1.msra.mxu0 0.0
    %155 = vmatprep.subr.mxu0 0.0
    %156 = vmatpush1.msra.mxu0 0.0
    %157 = vmatprep.subr.mxu0 0.0
    %158 = vmatpush1.msra.mxu0 0.0
    %159 = vmatprep.subr.mxu0 0.0
    %160 = vmatpush1.msra.mxu0 0.0
    %161 = vmatprep.subr.mxu0 0.0
    %162 = vmatpush1.msra.mxu0 0.0
    %163 = vmatprep.subr.mxu0 0.0
    %164 = vmatpush1.msra.mxu0 0.0
    %165 = vmatprep.subr.mxu0 0.0
    %166 = vmatpush1.msra.mxu0 0.0
    %167 = vmatprep.subr.mxu0 0.0
    %168 = vmatpush1.msra.mxu0 0.0
    %169 = vmatprep.subr.mxu0 0.0
    %170 = vmatpush1.msra.mxu0 0.0
    %171 = vmatprep.subr.mxu0 0.0
    %172 = vmatpush1.msra.mxu0 0.0
    %173 = vmatprep.subr.mxu0 0.0
    %174 = vmatpush1.msra.mxu0 0.0
    %175 = vmatprep.subr.mxu0 0.0
    %176 = vmatpush1.msra.mxu0 0.0
    %177 = vmatprep.subr.mxu0 0.0
    %178 = vmatpush1.msra.mxu0 0.0
    %179 = vmatprep.subr.mxu0 0.0
    %180 = vmatpush1.msra.mxu0 0.0
    %181 = vmatprep.subr.mxu0 0.0
    %182 = vmatpush1.msra.mxu0 0.0
    %183 = vmatprep.subr.mxu0 0.0
    %184 = vmatpush1.msra.mxu0 0.0
    %185 = vmatprep.subr.mxu0 0.0
    %186 = vmatpush1.msra.mxu0 0.0
    %187 = vmatprep.subr.mxu0 0.0
    %188 = vmatpush1.msra.mxu0 0.0
    %189 = vmatprep.subr.mxu0 0.0
    %190 = vmatpush1.msra.mxu0 0.0
    %191 = vmatprep.subr.mxu0 0.0
    %192 = vmatpush1.msra.mxu0 0.0
    %193 = vmatprep.subr.mxu0 0.0
    %194 = vmatpush1.msra.mxu0 0.0
    %195 = vmatprep.mubr.f32.mxu0 0.0
    %196 = vmatmul.mubr.f32.gmra.mrb[0].mxu0 %v80
    %v197 = vpop.f32.mrb[0].mxu0
    %v198 = vadd.f32 %v76, %v197
    %v199 = vpop.f32.mrb[0].mxu0
    %200 = vmatprep.mubr.f32.mxu0 0.0
    %201 = vmatmul.mubr.f32.gmra.mrb[0].mxu0 %v83
    %v202 = vpop.f32.mrb[0].mxu0
    %v203 = vadd.f32 %v76, %v202
    %v204 = vpop.f32.mrb[0].mxu0
    %205 = vmatprep.mubr.f32.mxu0 0.0
    %206 = vmatmul.mubr.f32.gmra.mrb[0].mxu0 %v86
    %v207 = vpop.f32.mrb[0].mxu0
    %v208 = vadd.f32 %v76, %v207
    %v209 = vpop.f32.mrb[0].mxu0
    %210 = vmatprep.mubr.f32.mxu0 0.0
    %211 = vmatmul.mubr.f32.gmra.mrb[0].mxu0 %v89
    %v212 = vpop.f32.mrb[0].mxu0
    %v213 = vadd.f32 %v76, %v212
    %v214 = vpop.f32.mrb[0].mxu0
    %215 = vmatprep.mubr.f32.mxu0 0.0
    %216 = vmatmul.mubr.f32.gmra.mrb[0].mxu0 %v92
    %v217 = vpop.f32.mrb[0].mxu0
    %v218 = vadd.f32 %v76, %v217
    %v219 = vpop.f32.mrb[0].mxu0
    %220 = vmatprep.mubr.f32.mxu0 0.0
    %221 = vmatmul.mubr.f32.gmra.mrb[0].mxu0 %v95
    %v222 = vpop.f32.mrb[0].mxu0
    %v223 = vadd.f32 %v76, %v222
    %v224 = vpop.f32.mrb[0].mxu0
    %225 = vmatprep.mubr.f32.mxu0 0.0
    %226 = vmatmul.mubr.f32.gmra.mrb[0].mxu0 %v98
    %v227 = vpop.f32.mrb[0].mxu0
    %v228 = vadd.f32 %v76, %v227
    %v229 = vpop.f32.mrb[0].mxu0
    %230 = vmatprep.mubr.f32.mxu0 0.0
    %231 = vmatmul.mubr.f32.gmra.mrb[0].mxu0 %v101
    %v232 = vpop.f32.mrb[0].mxu0
    %v233 = vadd.f32 %v76, %v232
    %v234 = vpop.f32.mrb[0].mxu0
    %235 = vmatprep.mubr.f32.mxu0 0.0
    %236 = vmatmul.mubr.f32.gmra.mrb[0].mxu0 %v104
    %v237 = vpop.f32.mrb[0].mxu0
    %v238 = vadd.f32 %v76, %v237
    %v239 = vpop.f32.mrb[0].mxu0
    %240 = vmatprep.mubr.f32.mxu0 0.0
    %241 = vmatmul.mubr.f32.gmra.mrb[0].mxu0 %v107
    %v242 = vpop.f32.mrb[0].mxu0
    %v243 = vadd.f32 %v76, %v242
    %v244 = vpop.f32.mrb[0].mxu0
    %245 = vmatprep.mubr.f32.mxu0 0.0
    %246 = vmatmul.mubr.f32.gmra.mrb[0].mxu0 %v110
    %v247 = vpop.f32.mrb[0].mxu0
    %v248 = vadd.f32 %v76, %v247
    %v249 = vpop.f32.mrb[0].mxu0
    %250 = vmatprep.mubr.f32.mxu0 0.0
    %251 = vmatmul.mubr.f32.gmra.mrb[0].mxu0 %v113
    %v252 = vpop.f32.mrb[0].mxu0
    %v253 = vadd.f32 %v76, %v252
    %v254 = vpop.f32.mrb[0].mxu0
    %255 = vmatprep.mubr.f32.mxu0 0.0
    %256 = vmatmul.mubr.f32.gmra.mrb[0].mxu0 %v116
    %v257 = vpop.f32.mrb[0].mxu0
    %v258 = vadd.f32 %v76, %v257
    %v259 = vpop.f32.mrb[0].mxu0
    %260 = vmatprep.mubr.f32.mxu0 0.0
    %261 = vmatmul.mubr.f32.gmra.mrb[0].mxu0 %v119
    %v262 = vpop.f32.mrb[0].mxu0
    %v263 = vadd.f32 %v76, %v262
    %v264 = vpop.f32.mrb[0].mxu0
    %265 = vmatprep.mubr.f32.mxu0 0.0
    %266 = vmatmul.mubr.f32.gmra.mrb[0].mxu0 %v122
    %v267 = vpop.f32.mrb[0].mxu0
    %v268 = vadd.f32 %v76, %v267
    %v269 = vpop.f32.mrb[0].mxu0
    %270 = vmatprep.mubr.f32.mxu0 0.0
    %271 = vmatmul.mubr.f32.gmra.mrb[0].mxu0 %v125
    %v272 = vpop.f32.mrb[0].mxu0
    %v273 = vadd.f32 %v76, %v272
    %v274 = vpop.f32.mrb[0].mxu0
    %275 = vdwg.mxu0
    %v276 = vmax.f32 %v198, 0.0
    %v277 = vmax.f32 %v203, 0.0
    %v278 = vmax.f32 %v208, 0.0
    %v279 = vmax.f32 %v213, 0.0
    %v280 = vmax.f32 %v218, 0.0
    %v281 = vmax.f32 %v223, 0.0
    %v282 = vmax.f32 %v228, 0.0
    %v283 = vmax.f32 %v233, 0.0
    %v284 = vmax.f32 %v238, 0.0
    %v285 = vmax.f32 %v243, 0.0
    %v286 = vmax.f32 %v248, 0.0
    %v287 = vmax.f32 %v253, 0.0
    %v288 = vmax.f32 %v258, 0.0
    %v289 = vmax.f32 %v263, 0.0
    %v290 = vmax.f32 %v268, 0.0
    %v291 = vmax.f32 %v273, 0.0
    %v292 = vmax.f32 %v276, %v278
    %v293 = vmax.f32 %v277, %v279
    %v294 = vmax.f32 %v292, %v280
    %v295 = vmax.f32 %v293, %v281
    %v296 = vmax.f32 %v294, %v282
    %v297 = vmax.f32 %v295, %v283
    %v298 = vmax.f32 %v296, %v284
    %v299 = vmax.f32 %v297, %v285
    %v300 = vmax.f32 %v298, %v286
    %v301 = vmax.f32 %v299, %v287
    %v302 = vmax.f32 %v300, %v288
    %v303 = vmax.f32 %v301, %v289
    %v304 = vmax.f32 %v302, %v290
    %v305 = vmax.f32 %v303, %v291
    %v307 = vlaneseq
    %v308 = vshrl.u32 %v307, 7
    %v309 = vsub.s32 0, %v308
    %v310 = vrot.slane %v46, %v309
    %vm312 = vcmask 261120
    %v314 = vsel %vm312, %v304, 0
    %v317 = vsel %vm312, %v305, 0
    %319 = vmatprep.subr.mxu0 0.0
    %320 = vmatpush1.msra.mxu0 %v38
    %321 = vmatprep.subr.mxu0 0.0
    %322 = vmatpush1.msra.mxu0 %v39
    %323 = vmatprep.subr.mxu0 0.0
    %324 = vmatpush1.msra.mxu0 %v40
    %325 = vmatprep.subr.mxu0 0.0
    %326 = vmatpush1.msra.mxu0 %v41
    %327 = vmatprep.subr.mxu0 0.0
    %328 = vmatpush1.msra.mxu0 0.0
    %329 = vmatprep.subr.mxu0 0.0
    %330 = vmatpush1.msra.mxu0 0.0
    %331 = vmatprep.subr.mxu0 0.0
    %332 = vmatpush1.msra.mxu0 0.0
    %333 = vmatprep.subr.mxu0 0.0
    %334 = vmatpush1.msra.mxu0 0.0
    %335 = vmatprep.subr.mxu0 0.0
    %336 = vmatpush1.msra.mxu0 0.0
    %337 = vmatprep.subr.mxu0 0.0
    %338 = vmatpush1.msra.mxu0 0.0
    %339 = vmatprep.subr.mxu0 0.0
    %340 = vmatpush1.msra.mxu0 0.0
    %341 = vmatprep.subr.mxu0 0.0
    %342 = vmatpush1.msra.mxu0 0.0
    %343 = vmatprep.subr.mxu0 0.0
    %344 = vmatpush1.msra.mxu0 0.0
    %345 = vmatprep.subr.mxu0 0.0
    %346 = vmatpush1.msra.mxu0 0.0
    %347 = vmatprep.subr.mxu0 0.0
    %348 = vmatpush1.msra.mxu0 0.0
    %349 = vmatprep.subr.mxu0 0.0
    %350 = vmatpush1.msra.mxu0 0.0
    %351 = vmatprep.subr.mxu0 0.0
    %352 = vmatpush1.msra.mxu0 0.0
    %353 = vmatprep.subr.mxu0 0.0
    %354 = vmatpush1.msra.mxu0 0.0
    %355 = vmatprep.subr.mxu0 0.0
    %356 = vmatpush1.msra.mxu0 0.0
    %357 = vmatprep.subr.mxu0 0.0
    %358 = vmatpush1.msra.mxu0 0.0
    %359 = vmatprep.subr.mxu0 0.0
    %360 = vmatpush1.msra.mxu0 0.0
    %361 = vmatprep.subr.mxu0 0.0
    %362 = vmatpush1.msra.mxu0 0.0
    %363 = vmatprep.subr.mxu0 0.0
    %364 = vmatpush1.msra.mxu0 0.0
    %365 = vmatprep.subr.mxu0 0.0
    %366 = vmatpush1.msra.mxu0 0.0
    %367 = vmatprep.subr.mxu0 0.0
    %368 = vmatpush1.msra.mxu0 0.0
    %369 = vmatprep.subr.mxu0 0.0
    %370 = vmatpush1.msra.mxu0 0.0
    %371 = vmatprep.subr.mxu0 0.0
    %372 = vmatpush1.msra.mxu0 0.0
    %373 = vmatprep.subr.mxu0 0.0
    %374 = vmatpush1.msra.mxu0 0.0
    %375 = vmatprep.subr.mxu0 0.0
    %376 = vmatpush1.msra.mxu0 0.0
    %377 = vmatprep.subr.mxu0 0.0
    %378 = vmatpush1.msra.mxu0 0.0
    %379 = vmatprep.subr.mxu0 0.0
    %380 = vmatpush1.msra.mxu0 0.0
    %381 = vmatprep.subr.mxu0 0.0
    %382 = vmatpush1.msra.mxu0 0.0
    %383 = vmatprep.mubr.f32.mxu0 0.0
    %384 = vmatmul.mubr.f32.gmra.mrb[0].mxu0 %v314
    %v385 = vpop.f32.mrb[0].mxu0
    %v386 = vadd.f32 %v310, %v385
    %v387 = vpop.f32.mrb[0].mxu0
    %388 = vmatprep.mubr.f32.mxu0 0.0
    %389 = vmatmul.mubr.f32.gmra.mrb[0].mxu0 %v317
    %v390 = vpop.f32.mrb[0].mxu0
    %v391 = vadd.f32 %v310, %v390
    %v392 = vpop.f32.mrb[0].mxu0
    %393 = vdwg.mxu0
    %v395 = vsel %vm312, 0.0, 0
    %397 = vmatprep.subr.mxu0 0.0
    %398 = vmatpush1.msra.mxu0 %v42
    %399 = vmatprep.subr.mxu0 0.0
    %400 = vmatpush1.msra.mxu0 %v43
    %401 = vmatprep.subr.mxu0 0.0
    %402 = vmatpush1.msra.mxu0 %v44
    %403 = vmatprep.subr.mxu0 0.0
    %404 = vmatpush1.msra.mxu0 %v45
    %405 = vmatprep.subr.mxu0 0.0
    %406 = vmatpush1.msra.mxu0 0.0
    %407 = vmatprep.subr.mxu0 0.0
    %408 = vmatpush1.msra.mxu0 0.0
    %409 = vmatprep.subr.mxu0 0.0
    %410 = vmatpush1.msra.mxu0 0.0
    %411 = vmatprep.subr.mxu0 0.0
    %412 = vmatpush1.msra.mxu0 0.0
    %413 = vmatprep.subr.mxu0 0.0
    %414 = vmatpush1.msra.mxu0 0.0
    %415 = vmatprep.subr.mxu0 0.0
    %416 = vmatpush1.msra.mxu0 0.0
    %417 = vmatprep.subr.mxu0 0.0
    %418 = vmatpush1.msra.mxu0 0.0
    %419 = vmatprep.subr.mxu0 0.0
    %420 = vmatpush1.msra.mxu0 0.0
    %421 = vmatprep.subr.mxu0 0.0
    %422 = vmatpush1.msra.mxu0 0.0
    %423 = vmatprep.subr.mxu0 0.0
    %424 = vmatpush1.msra.mxu0 0.0
    %425 = vmatprep.subr.mxu0 0.0
    %426 = vmatpush1.msra.mxu0 0.0
    %427 = vmatprep.subr.mxu0 0.0
    %428 = vmatpush1.msra.mxu0 0.0
    %429 = vmatprep.subr.mxu0 0.0
    %430 = vmatpush1.msra.mxu0 0.0
    %431 = vmatprep.subr.mxu0 0.0
    %432 = vmatpush1.msra.mxu0 0.0
    %433 = vmatprep.subr.mxu0 0.0
    %434 = vmatpush1.msra.mxu0 0.0
    %435 = vmatprep.subr.mxu0 0.0
    %436 = vmatpush1.msra.mxu0 0.0
    %437 = vmatprep.subr.mxu0 0.0
    %438 = vmatpush1.msra.mxu0 0.0
    %439 = vmatprep.subr.mxu0 0.0
    %440 = vmatpush1.msra.mxu0 0.0
    %441 = vmatprep.subr.mxu0 0.0
    %442 = vmatpush1.msra.mxu0 0.0
    %443 = vmatprep.subr.mxu0 0.0
    %444 = vmatpush1.msra.mxu0 0.0
    %445 = vmatprep.subr.mxu0 0.0
    %446 = vmatpush1.msra.mxu0 0.0
    %447 = vmatprep.subr.mxu0 0.0
    %448 = vmatpush1.msra.mxu0 0.0
    %449 = vmatprep.subr.mxu0 0.0
    %450 = vmatpush1.msra.mxu0 0.0
    %451 = vmatprep.subr.mxu0 0.0
    %452 = vmatpush1.msra.mxu0 0.0
    %453 = vmatprep.subr.mxu0 0.0
    %454 = vmatpush1.msra.mxu0 0.0
    %455 = vmatprep.subr.mxu0 0.0
    %456 = vmatpush1.msra.mxu0 0.0
    %457 = vmatprep.subr.mxu0 0.0
    %458 = vmatpush1.msra.mxu0 0.0
    %459 = vmatprep.subr.mxu0 0.0
    %460 = vmatpush1.msra.mxu0 0.0
    %461 = vmatprep.mubr.f32.mxu0 0.0
    %462 = vmatmul.mubr.f32.gmra.mrb[0].mxu0 %v395
    %v463 = vpop.f32.mrb[0].mxu0
    %v464 = vadd.f32 0.0, %v463
    %v465 = vpop.f32.mrb[0].mxu0
    %466 = vdwg.mxu0
    %v467 = vadd.f32 %v386, %v464
    %v468 = vxor.u32 %v467, 2147483648
    %v469 = vmul.f32 %v468, 1.442695
    %v470 = vpow.pop %v469
    %v471 = vadd.f32 %v470, 1.0
    %v472 = vrcp.pop %v471
    %v473 = vmul.f32 1.0, %v472
    %v474 = vtanh.pop %v467
    %v475 = vmul.f32 %v473, 0.0
    %477 = vrot.lane.b32.xlu0 %v474, 64
    %v478 = vpop.permute.xlu0 %477
    %v480 = vmul.f32 %v473, %v478
    %482 = vrot.lane.b32.xlu0 %v480, 32
    %v483 = vpop.permute.xlu0 %482
    %v485 = vadd.f32 %v475, %v483
    %v486 = vtanh.pop %v485
    %488 = vrot.lane.b32.xlu0 %v486, 64
    %v489 = vpop.permute.xlu0 %488
    %v491 = vmul.f32 %v473, %v489
    %493 = vrot.lane.b32.xlu0 %v491, 32
    %v494 = vpop.permute.xlu0 %493
    %v496 = vsel %vm312, %v494, 0.0
    %v498 = vlaneseq
    %v499 = vshrl.u32 %v498, 7
    %v500 = vsub.s32 0, %v499
    %v501 = vrot.slane %v55, %v500
    %vm503 = vcmask 523264
    %v505 = vsel %vm503, %v496, 0
    %507 = vmatprep.subr.mxu0 0.0
    %508 = vmatpush1.msra.mxu0 %v47
    %509 = vmatprep.subr.mxu0 0.0
    %510 = vmatpush1.msra.mxu0 %v48
    %511 = vmatprep.subr.mxu0 0.0
    %512 = vmatpush1.msra.mxu0 %v49
    %513 = vmatprep.subr.mxu0 0.0
    %514 = vmatpush1.msra.mxu0 %v50
    %515 = vmatprep.subr.mxu0 0.0
    %516 = vmatpush1.msra.mxu0 %v51
    %517 = vmatprep.subr.mxu0 0.0
    %518 = vmatpush1.msra.mxu0 %v52
    %519 = vmatprep.subr.mxu0 0.0
    %520 = vmatpush1.msra.mxu0 %v53
    %521 = vmatprep.subr.mxu0 0.0
    %522 = vmatpush1.msra.mxu0 %v54
    %523 = vmatprep.subr.mxu0 0.0
    %524 = vmatpush1.msra.mxu0 0.0
    %525 = vmatprep.subr.mxu0 0.0
    %526 = vmatpush1.msra.mxu0 0.0
    %527 = vmatprep.subr.mxu0 0.0
    %528 = vmatpush1.msra.mxu0 0.0
    %529 = vmatprep.subr.mxu0 0.0
    %530 = vmatpush1.msra.mxu0 0.0
    %531 = vmatprep.subr.mxu0 0.0
    %532 = vmatpush1.msra.mxu0 0.0
    %533 = vmatprep.subr.mxu0 0.0
    %534 = vmatpush1.msra.mxu0 0.0
    %535 = vmatprep.subr.mxu0 0.0
    %536 = vmatpush1.msra.mxu0 0.0
    %537 = vmatprep.subr.mxu0 0.0
    %538 = vmatpush1.msra.mxu0 0.0
    %539 = vmatprep.subr.mxu0 0.0
    %540 = vmatpush1.msra.mxu0 0.0
    %541 = vmatprep.subr.mxu0 0.0
    %542 = vmatpush1.msra.mxu0 0.0
    %543 = vmatprep.subr.mxu0 0.0
    %544 = vmatpush1.msra.mxu0 0.0
    %545 = vmatprep.subr.mxu0 0.0
    %546 = vmatpush1.msra.mxu0 0.0
    %547 = vmatprep.subr.mxu0 0.0
    %548 = vmatpush1.msra.mxu0 0.0
    %549 = vmatprep.subr.mxu0 0.0
    %550 = vmatpush1.msra.mxu0 0.0
    %551 = vmatprep.subr.mxu0 0.0
    %552 = vmatpush1.msra.mxu0 0.0
    %553 = vmatprep.subr.mxu0 0.0
    %554 = vmatpush1.msra.mxu0 0.0
    %555 = vmatprep.subr.mxu0 0.0
    %556 = vmatpush1.msra.mxu0 0.0
    %557 = vmatprep.subr.mxu0 0.0
    %558 = vmatpush1.msra.mxu0 0.0
    %559 = vmatprep.subr.mxu0 0.0
    %560 = vmatpush1.msra.mxu0 0.0
    %561 = vmatprep.subr.mxu0 0.0
    %562 = vmatpush1.msra.mxu0 0.0
    %563 = vmatprep.subr.mxu0 0.0
    %564 = vmatpush1.msra.mxu0 0.0
    %565 = vmatprep.subr.mxu0 0.0
    %566 = vmatpush1.msra.mxu0 0.0
    %567 = vmatprep.subr.mxu0 0.0
    %568 = vmatpush1.msra.mxu0 0.0
    %569 = vmatprep.subr.mxu0 0.0
    %570 = vmatpush1.msra.mxu0 0.0
    %571 = vmatprep.mubr.f32.mxu0 0.0
    %572 = vmatmul.mubr.f32.gmra.mrb[0].mxu0 %v505
    %v573 = vpop.f32.mrb[0].mxu0
    %v574 = vadd.f32 %v501, %v573
    %v575 = vpop.f32.mrb[0].mxu0
    %576 = vdwg.mxu0
    %v577 = vxor.u32 %v574, 2147483648
    %v578 = vmul.f32 %v577, 1.442695
    %v579 = vpow.pop %v578
    %v580 = vadd.f32 %v579, 1.0
    %v581 = vrcp.pop %v580
    %v582 = vmul.f32 1.0, %v581
    %v583 = vtanh.pop %v574
    %v584 = vmul.f32 %v582, 0.0
    %586 = vrot.lane.b32.xlu0 %v583, 64
    %v587 = vpop.permute.xlu0 %586
    %v589 = vmul.f32 %v582, %v587
    %591 = vrot.lane.b32.xlu0 %v589, 32
    %v592 = vpop.permute.xlu0 %591
    %v594 = vadd.f32 %v584, %v592
    %v595 = vtanh.pop %v594
    %597 = vrot.lane.b32.xlu0 %v595, 64
    %v598 = vpop.permute.xlu0 %597
    %v600 = vmul.f32 %v582, %v598
    %v601 = vsel %vm312, %v494, 0
    %603 = vmatprep.subr.mxu0 0.0
    %604 = vmatpush1.msra.mxu0 %v42
    %605 = vmatprep.subr.mxu0 0.0
    %606 = vmatpush1.msra.mxu0 %v43
    %607 = vmatprep.subr.mxu0 0.0
    %608 = vmatpush1.msra.mxu0 %v44
    %609 = vmatprep.subr.mxu0 0.0
    %610 = vmatpush1.msra.mxu0 %v45
    %611 = vmatprep.subr.mxu0 0.0
    %612 = vmatpush1.msra.mxu0 0.0
    %613 = vmatprep.subr.mxu0 0.0
    %614 = vmatpush1.msra.mxu0 0.0
    %615 = vmatprep.subr.mxu0 0.0
    %616 = vmatpush1.msra.mxu0 0.0
    %617 = vmatprep.subr.mxu0 0.0
    %618 = vmatpush1.msra.mxu0 0.0
    %619 = vmatprep.subr.mxu0 0.0
    %620 = vmatpush1.msra.mxu0 0.0
    %621 = vmatprep.subr.mxu0 0.0
    %622 = vmatpush1.msra.mxu0 0.0
    %623 = vmatprep.subr.mxu0 0.0
    %624 = vmatpush1.msra.mxu0 0.0
    %625 = vmatprep.subr.mxu0 0.0
    %626 = vmatpush1.msra.mxu0 0.0
    %627 = vmatprep.subr.mxu0 0.0
    %628 = vmatpush1.msra.mxu0 0.0
    %629 = vmatprep.subr.mxu0 0.0
    %630 = vmatpush1.msra.mxu0 0.0
    %631 = vmatprep.subr.mxu0 0.0
    %632 = vmatpush1.msra.mxu0 0.0
    %633 = vmatprep.subr.mxu0 0.0
    %634 = vmatpush1.msra.mxu0 0.0
    %635 = vmatprep.subr.mxu0 0.0
    %636 = vmatpush1.msra.mxu0 0.0
    %637 = vmatprep.subr.mxu0 0.0
    %638 = vmatpush1.msra.mxu0 0.0
    %639 = vmatprep.subr.mxu0 0.0
    %640 = vmatpush1.msra.mxu0 0.0
    %641 = vmatprep.subr.mxu0 0.0
    %642 = vmatpush1.msra.mxu0 0.0
    %643 = vmatprep.subr.mxu0 0.0
    %644 = vmatpush1.msra.mxu0 0.0
    %645 = vmatprep.subr.mxu0 0.0
    %646 = vmatpush1.msra.mxu0 0.0
    %647 = vmatprep.subr.mxu0 0.0
    %648 = vmatpush1.msra.mxu0 0.0
    %649 = vmatprep.subr.mxu0 0.0
    %650 = vmatpush1.msra.mxu0 0.0
    %651 = vmatprep.subr.mxu0 0.0
    %652 = vmatpush1.msra.mxu0 0.0
    %653 = vmatprep.subr.mxu0 0.0
    %654 = vmatpush1.msra.mxu0 0.0
    %655 = vmatprep.subr.mxu0 0.0
    %656 = vmatpush1.msra.mxu0 0.0
    %657 = vmatprep.subr.mxu0 0.0
    %658 = vmatpush1.msra.mxu0 0.0
    %659 = vmatprep.subr.mxu0 0.0
    %660 = vmatpush1.msra.mxu0 0.0
    %661 = vmatprep.subr.mxu0 0.0
    %662 = vmatpush1.msra.mxu0 0.0
    %663 = vmatprep.subr.mxu0 0.0
    %664 = vmatpush1.msra.mxu0 0.0
    %665 = vmatprep.subr.mxu0 0.0
    %666 = vmatpush1.msra.mxu0 0.0
    %667 = vmatprep.mubr.f32.mxu0 0.0
    %668 = vmatmul.mubr.f32.gmra.mrb[0].mxu0 %v601
    %v669 = vpop.f32.mrb[0].mxu0
    %v670 = vadd.f32 0.0, %v669
    %v671 = vpop.f32.mrb[0].mxu0
    %672 = vdwg.mxu0
    %v674 = vrot.slane %v670, 6
    %v676 = vadd.f32 %v386, %v674
    %v677 = vxor.u32 %v676, 2147483648
    %v678 = vmul.f32 %v677, 1.442695
    %v679 = vpow.pop %v678
    %v680 = vadd.f32 %v679, 1.0
    %v681 = vrcp.pop %v680
    %v682 = vmul.f32 1.0, %v681
    %v683 = vtanh.pop %v676
    %v685 = vrot.slane %v485, 6
    %v687 = vmul.f32 %v682, %v685
    %689 = vrot.lane.b32.xlu0 %v683, 64
    %v690 = vpop.permute.xlu0 %689
    %v692 = vmul.f32 %v682, %v690
    %694 = vrot.lane.b32.xlu0 %v692, 32
    %v695 = vpop.permute.xlu0 %694
    %v697 = vadd.f32 %v687, %v695
    %v698 = vtanh.pop %v697
    %700 = vrot.lane.b32.xlu0 %v698, 64
    %v701 = vpop.permute.xlu0 %700
    %v703 = vmul.f32 %v682, %v701
    %705 = vrot.lane.b32.xlu0 %v703, 32
    %v706 = vpop.permute.xlu0 %705
    %v709 = vrot.slane %v600, 6
    %710 = vrot.lane.b32.xlu0 %v709, 64
    %v711 = vpop.permute.xlu0 %710
    %v713 = vsel %vm312, %v706, %v711
    %v715 = vrot.slane %v713, 2
    %v716 = vsel %vm503, %v715, 0
    %718 = vmatprep.subr.mxu0 0.0
    %719 = vmatpush1.msra.mxu0 %v47
    %720 = vmatprep.subr.mxu0 0.0
    %721 = vmatpush1.msra.mxu0 %v48
    %722 = vmatprep.subr.mxu0 0.0
    %723 = vmatpush1.msra.mxu0 %v49
    %724 = vmatprep.subr.mxu0 0.0
    %725 = vmatpush1.msra.mxu0 %v50
    %726 = vmatprep.subr.mxu0 0.0
    %727 = vmatpush1.msra.mxu0 %v51
    %728 = vmatprep.subr.mxu0 0.0
    %729 = vmatpush1.msra.mxu0 %v52
    %730 = vmatprep.subr.mxu0 0.0
    %731 = vmatpush1.msra.mxu0 %v53
    %732 = vmatprep.subr.mxu0 0.0
    %733 = vmatpush1.msra.mxu0 %v54
    %734 = vmatprep.subr.mxu0 0.0
    %735 = vmatpush1.msra.mxu0 0.0
    %736 = vmatprep.subr.mxu0 0.0
    %737 = vmatpush1.msra.mxu0 0.0
    %738 = vmatprep.subr.mxu0 0.0
    %739 = vmatpush1.msra.mxu0 0.0
    %740 = vmatprep.subr.mxu0 0.0
    %741 = vmatpush1.msra.mxu0 0.0
    %742 = vmatprep.subr.mxu0 0.0
    %743 = vmatpush1.msra.mxu0 0.0
    %744 = vmatprep.subr.mxu0 0.0
    %745 = vmatpush1.msra.mxu0 0.0
    %746 = vmatprep.subr.mxu0 0.0
    %747 = vmatpush1.msra.mxu0 0.0
    %748 = vmatprep.subr.mxu0 0.0
    %749 = vmatpush1.msra.mxu0 0.0
    %750 = vmatprep.subr.mxu0 0.0
    %751 = vmatpush1.msra.mxu0 0.0
    %752 = vmatprep.subr.mxu0 0.0
    %753 = vmatpush1.msra.mxu0 0.0
    %754 = vmatprep.subr.mxu0 0.0
    %755 = vmatpush1.msra.mxu0 0.0
    %756 = vmatprep.subr.mxu0 0.0
    %757 = vmatpush1.msra.mxu0 0.0
    %758 = vmatprep.subr.mxu0 0.0
    %759 = vmatpush1.msra.mxu0 0.0
    %760 = vmatprep.subr.mxu0 0.0
    %761 = vmatpush1.msra.mxu0 0.0
    %762 = vmatprep.subr.mxu0 0.0
    %763 = vmatpush1.msra.mxu0 0.0
    %764 = vmatprep.subr.mxu0 0.0
    %765 = vmatpush1.msra.mxu0 0.0
    %766 = vmatprep.subr.mxu0 0.0
    %767 = vmatpush1.msra.mxu0 0.0
    %768 = vmatprep.subr.mxu0 0.0
    %769 = vmatpush1.msra.mxu0 0.0
    %770 = vmatprep.subr.mxu0 0.0
    %771 = vmatpush1.msra.mxu0 0.0
    %772 = vmatprep.subr.mxu0 0.0
    %773 = vmatpush1.msra.mxu0 0.0
    %774 = vmatprep.subr.mxu0 0.0
    %775 = vmatpush1.msra.mxu0 0.0
    %776 = vmatprep.subr.mxu0 0.0
    %777 = vmatpush1.msra.mxu0 0.0
    %778 = vmatprep.subr.mxu0 0.0
    %779 = vmatpush1.msra.mxu0 0.0
    %780 = vmatprep.subr.mxu0 0.0
    %781 = vmatpush1.msra.mxu0 0.0
    %782 = vmatprep.mubr.f32.mxu0 0.0
    %783 = vmatmul.mubr.f32.gmra.mrb[0].mxu0 %v716
    %v784 = vpop.f32.mrb[0].mxu0
    %v785 = vadd.f32 %v501, %v784
    %v786 = vpop.f32.mrb[0].mxu0
    %787 = vdwg.mxu0
    %v788 = vxor.u32 %v785, 2147483648
    %v789 = vmul.f32 %v788, 1.442695
    %v790 = vpow.pop %v789
    %v791 = vadd.f32 %v790, 1.0
    %v792 = vrcp.pop %v791
    %v793 = vmul.f32 1.0, %v792
    %v794 = vtanh.pop %v785
    %v795 = vmul.f32 %v793, %v594
    %797 = vrot.lane.b32.xlu0 %v794, 64
    %v798 = vpop.permute.xlu0 %797
    %v800 = vmul.f32 %v793, %v798
    %802 = vrot.lane.b32.xlu0 %v800, 32
    %v803 = vpop.permute.xlu0 %802
    %v805 = vadd.f32 %v795, %v803
    %v806 = vtanh.pop %v805
    %808 = vrot.lane.b32.xlu0 %v806, 64
    %v809 = vpop.permute.xlu0 %808
    %v811 = vmul.f32 %v793, %v809
    %v812 = vrot.slane %v703, 2
    %813 = vrot.lane.b32.xlu0 %v812, 32
    %v814 = vpop.permute.xlu0 %813
    %v815 = vsel %vm312, %v814, 0
    %817 = vmatprep.subr.mxu0 0.0
    %818 = vmatpush1.msra.mxu0 %v42
    %819 = vmatprep.subr.mxu0 0.0
    %820 = vmatpush1.msra.mxu0 %v43
    %821 = vmatprep.subr.mxu0 0.0
    %822 = vmatpush1.msra.mxu0 %v44
    %823 = vmatprep.subr.mxu0 0.0
    %824 = vmatpush1.msra.mxu0 %v45
    %825 = vmatprep.subr.mxu0 0.0
    %826 = vmatpush1.msra.mxu0 0.0
    %827 = vmatprep.subr.mxu0 0.0
    %828 = vmatpush1.msra.mxu0 0.0
    %829 = vmatprep.subr.mxu0 0.0
    %830 = vmatpush1.msra.mxu0 0.0
    %831 = vmatprep.subr.mxu0 0.0
    %832 = vmatpush1.msra.mxu0 0.0
    %833 = vmatprep.subr.mxu0 0.0
    %834 = vmatpush1.msra.mxu0 0.0
    %835 = vmatprep.subr.mxu0 0.0
    %836 = vmatpush1.msra.mxu0 0.0
    %837 = vmatprep.subr.mxu0 0.0
    %838 = vmatpush1.msra.mxu0 0.0
    %839 = vmatprep.subr.mxu0 0.0
    %840 = vmatpush1.msra.mxu0 0.0
    %841 = vmatprep.subr.mxu0 0.0
    %842 = vmatpush1.msra.mxu0 0.0
    %843 = vmatprep.subr.mxu0 0.0
    %844 = vmatpush1.msra.mxu0 0.0
    %845 = vmatprep.subr.mxu0 0.0
    %846 = vmatpush1.msra.mxu0 0.0
    %847 = vmatprep.subr.mxu0 0.0
    %848 = vmatpush1.msra.mxu0 0.0
    %849 = vmatprep.subr.mxu0 0.0
    %850 = vmatpush1.msra.mxu0 0.0
    %851 = vmatprep.subr.mxu0 0.0
    %852 = vmatpush1.msra.mxu0 0.0
    %853 = vmatprep.subr.mxu0 0.0
    %854 = vmatpush1.msra.mxu0 0.0
    %855 = vmatprep.subr.mxu0 0.0
    %856 = vmatpush1.msra.mxu0 0.0
    %857 = vmatprep.subr.mxu0 0.0
    %858 = vmatpush1.msra.mxu0 0.0
    %859 = vmatprep.subr.mxu0 0.0
    %860 = vmatpush1.msra.mxu0 0.0
    %861 = vmatprep.subr.mxu0 0.0
    %862 = vmatpush1.msra.mxu0 0.0
    %863 = vmatprep.subr.mxu0 0.0
    %864 = vmatpush1.msra.mxu0 0.0
    %865 = vmatprep.subr.mxu0 0.0
    %866 = vmatpush1.msra.mxu0 0.0
    %867 = vmatprep.subr.mxu0 0.0
    %868 = vmatpush1.msra.mxu0 0.0
    %869 = vmatprep.subr.mxu0 0.0
    %870 = vmatpush1.msra.mxu0 0.0
    %871 = vmatprep.subr.mxu0 0.0
    %872 = vmatpush1.msra.mxu0 0.0
    %873 = vmatprep.subr.mxu0 0.0
    %874 = vmatpush1.msra.mxu0 0.0
    %875 = vmatprep.subr.mxu0 0.0
    %876 = vmatpush1.msra.mxu0 0.0
    %877 = vmatprep.subr.mxu0 0.0
    %878 = vmatpush1.msra.mxu0 0.0
    %879 = vmatprep.subr.mxu0 0.0
    %880 = vmatpush1.msra.mxu0 0.0
    %881 = vmatprep.mubr.f32.mxu0 0.0
    %882 = vmatmul.mubr.f32.gmra.mrb[0].mxu0 %v815
    %v883 = vpop.f32.mrb[0].mxu0
    %v884 = vadd.f32 0.0, %v883
    %v885 = vpop.f32.mrb[0].mxu0
    %886 = vdwg.mxu0
    %v888 = vrot.slane %v884, 4
    %v890 = vadd.f32 %v386, %v888
    %v891 = vxor.u32 %v890, 2147483648
    %v892 = vmul.f32 %v891, 1.442695
    %v893 = vpow.pop %v892
    %v894 = vadd.f32 %v893, 1.0
    %v895 = vrcp.pop %v894
    %v896 = vmul.f32 1.0, %v895
    %v897 = vtanh.pop %v890
    %v899 = vrot.slane %v697, 6
    %v901 = vmul.f32 %v896, %v899
    %903 = vrot.lane.b32.xlu0 %v897, 64
    %v904 = vpop.permute.xlu0 %903
    %v906 = vmul.f32 %v896, %v904
    %908 = vrot.lane.b32.xlu0 %v906, 32
    %v909 = vpop.permute.xlu0 %908
    %v911 = vadd.f32 %v901, %v909
    %v912 = vtanh.pop %v911
    %914 = vrot.lane.b32.xlu0 %v912, 64
    %v915 = vpop.permute.xlu0 %914
    %v917 = vmul.f32 %v896, %v915
    %919 = vrot.lane.b32.xlu0 %v917, 32
    %v920 = vpop.permute.xlu0 %919
    %v923 = vrot.slane %v811, 4
    %924 = vrot.lane.b32.xlu0 %v923, 64
    %v925 = vpop.permute.xlu0 %924
    %v927 = vsel %vm312, %v920, %v925
    %v929 = vrot.slane %v927, 4
    %v930 = vsel %vm503, %v929, 0
    %932 = vmatprep.subr.mxu0 0.0
    %933 = vmatpush1.msra.mxu0 %v47
    %934 = vmatprep.subr.mxu0 0.0
    %935 = vmatpush1.msra.mxu0 %v48
    %936 = vmatprep.subr.mxu0 0.0
    %937 = vmatpush1.msra.mxu0 %v49
    %938 = vmatprep.subr.mxu0 0.0
    %939 = vmatpush1.msra.mxu0 %v50
    %940 = vmatprep.subr.mxu0 0.0
    %941 = vmatpush1.msra.mxu0 %v51
    %942 = vmatprep.subr.mxu0 0.0
    %943 = vmatpush1.msra.mxu0 %v52
    %944 = vmatprep.subr.mxu0 0.0
    %945 = vmatpush1.msra.mxu0 %v53
    %946 = vmatprep.subr.mxu0 0.0
    %947 = vmatpush1.msra.mxu0 %v54
    %948 = vmatprep.subr.mxu0 0.0
    %949 = vmatpush1.msra.mxu0 0.0
    %950 = vmatprep.subr.mxu0 0.0
    %951 = vmatpush1.msra.mxu0 0.0
    %952 = vmatprep.subr.mxu0 0.0
    %953 = vmatpush1.msra.mxu0 0.0
    %954 = vmatprep.subr.mxu0 0.0
    %955 = vmatpush1.msra.mxu0 0.0
    %956 = vmatprep.subr.mxu0 0.0
    %957 = vmatpush1.msra.mxu0 0.0
    %958 = vmatprep.subr.mxu0 0.0
    %959 = vmatpush1.msra.mxu0 0.0
    %960 = vmatprep.subr.mxu0 0.0
    %961 = vmatpush1.msra.mxu0 0.0
    %962 = vmatprep.subr.mxu0 0.0
    %963 = vmatpush1.msra.mxu0 0.0
    %964 = vmatprep.subr.mxu0 0.0
    %965 = vmatpush1.msra.mxu0 0.0
    %966 = vmatprep.subr.mxu0 0.0
    %967 = vmatpush1.msra.mxu0 0.0
    %968 = vmatprep.subr.mxu0 0.0
    %969 = vmatpush1.msra.mxu0 0.0
    %970 = vmatprep.subr.mxu0 0.0
    %971 = vmatpush1.msra.mxu0 0.0
    %972 = vmatprep.subr.mxu0 0.0
    %973 = vmatpush1.msra.mxu0 0.0
    %974 = vmatprep.subr.mxu0 0.0
    %975 = vmatpush1.msra.mxu0 0.0
    %976 = vmatprep.subr.mxu0 0.0
    %977 = vmatpush1.msra.mxu0 0.0
    %978 = vmatprep.subr.mxu0 0.0
    %979 = vmatpush1.msra.mxu0 0.0
    %980 = vmatprep.subr.mxu0 0.0
    %981 = vmatpush1.msra.mxu0 0.0
    %982 = vmatprep.subr.mxu0 0.0
    %983 = vmatpush1.msra.mxu0 0.0
    %984 = vmatprep.subr.mxu0 0.0
    %985 = vmatpush1.msra.mxu0 0.0
    %986 = vmatprep.subr.mxu0 0.0
    %987 = vmatpush1.msra.mxu0 0.0
    %988 = vmatprep.subr.mxu0 0.0
    %989 = vmatpush1.msra.mxu0 0.0
    %990 = vmatprep.subr.mxu0 0.0
    %991 = vmatpush1.msra.mxu0 0.0
    %992 = vmatprep.subr.mxu0 0.0
    %993 = vmatpush1.msra.mxu0 0.0
    %994 = vmatprep.subr.mxu0 0.0
    %995 = vmatpush1.msra.mxu0 0.0
    %996 = vmatprep.mubr.f32.mxu0 0.0
    %997 = vmatmul.mubr.f32.gmra.mrb[0].mxu0 %v930
    %v998 = vpop.f32.mrb[0].mxu0
    %v999 = vadd.f32 %v501, %v998
    %v1000 = vpop.f32.mrb[0].mxu0
    %1001 = vdwg.mxu0
    %v1002 = vxor.u32 %v999, 2147483648
    %v1003 = vmul.f32 %v1002, 1.442695
    %v1004 = vpow.pop %v1003
    %v1005 = vadd.f32 %v1004, 1.0
    %v1006 = vrcp.pop %v1005
    %v1007 = vmul.f32 1.0, %v1006
    %v1008 = vtanh.pop %v999
    %v1009 = vmul.f32 %v1007, %v805
    %1011 = vrot.lane.b32.xlu0 %v1008, 64
    %v1012 = vpop.permute.xlu0 %1011
    %v1014 = vmul.f32 %v1007, %v1012
    %1016 = vrot.lane.b32.xlu0 %v1014, 32
    %v1017 = vpop.permute.xlu0 %1016
    %v1019 = vadd.f32 %v1009, %v1017
    %v1020 = vtanh.pop %v1019
    %1022 = vrot.lane.b32.xlu0 %v1020, 64
    %v1023 = vpop.permute.xlu0 %1022
    %v1025 = vmul.f32 %v1007, %v1023
    %v1026 = vrot.slane %v917, 4
    %1027 = vrot.lane.b32.xlu0 %v1026, 32
    %v1028 = vpop.permute.xlu0 %1027
    %v1029 = vsel %vm312, %v1028, 0
    %1031 = vmatprep.subr.mxu0 0.0
    %1032 = vmatpush1.msra.mxu0 %v42
    %1033 = vmatprep.subr.mxu0 0.0
    %1034 = vmatpush1.msra.mxu0 %v43
    %1035 = vmatprep.subr.mxu0 0.0
    %1036 = vmatpush1.msra.mxu0 %v44
    %1037 = vmatprep.subr.mxu0 0.0
    %1038 = vmatpush1.msra.mxu0 %v45
    %1039 = vmatprep.subr.mxu0 0.0
    %1040 = vmatpush1.msra.mxu0 0.0
    %1041 = vmatprep.subr.mxu0 0.0
    %1042 = vmatpush1.msra.mxu0 0.0
    %1043 = vmatprep.subr.mxu0 0.0
    %1044 = vmatpush1.msra.mxu0 0.0
    %1045 = vmatprep.subr.mxu0 0.0
    %1046 = vmatpush1.msra.mxu0 0.0
    %1047 = vmatprep.subr.mxu0 0.0
    %1048 = vmatpush1.msra.mxu0 0.0
    %1049 = vmatprep.subr.mxu0 0.0
    %1050 = vmatpush1.msra.mxu0 0.0
    %1051 = vmatprep.subr.mxu0 0.0
    %1052 = vmatpush1.msra.mxu0 0.0
    %1053 = vmatprep.subr.mxu0 0.0
    %1054 = vmatpush1.msra.mxu0 0.0
    %1055 = vmatprep.subr.mxu0 0.0
    %1056 = vmatpush1.msra.mxu0 0.0
    %1057 = vmatprep.subr.mxu0 0.0
    %1058 = vmatpush1.msra.mxu0 0.0
    %1059 = vmatprep.subr.mxu0 0.0
    %1060 = vmatpush1.msra.mxu0 0.0
    %1061 = vmatprep.subr.mxu0 0.0
    %1062 = vmatpush1.msra.mxu0 0.0
    %1063 = vmatprep.subr.mxu0 0.0
    %1064 = vmatpush1.msra.mxu0 0.0
    %1065 = vmatprep.subr.mxu0 0.0
    %1066 = vmatpush1.msra.mxu0 0.0
    %1067 = vmatprep.subr.mxu0 0.0
    %1068 = vmatpush1.msra.mxu0 0.0
    %1069 = vmatprep.subr.mxu0 0.0
    %1070 = vmatpush1.msra.mxu0 0.0
    %1071 = vmatprep.subr.mxu0 0.0
    %1072 = vmatpush1.msra.mxu0 0.0
    %1073 = vmatprep.subr.mxu0 0.0
    %1074 = vmatpush1.msra.mxu0 0.0
    %1075 = vmatprep.subr.mxu0 0.0
    %1076 = vmatpush1.msra.mxu0 0.0
    %1077 = vmatprep.subr.mxu0 0.0
    %1078 = vmatpush1.msra.mxu0 0.0
    %1079 = vmatprep.subr.mxu0 0.0
    %1080 = vmatpush1.msra.mxu0 0.0
    %1081 = vmatprep.subr.mxu0 0.0
    %1082 = vmatpush1.msra.mxu0 0.0
    %1083 = vmatprep.subr.mxu0 0.0
    %1084 = vmatpush1.msra.mxu0 0.0
    %1085 = vmatprep.subr.mxu0 0.0
    %1086 = vmatpush1.msra.mxu0 0.0
    %1087 = vmatprep.subr.mxu0 0.0
    %1088 = vmatpush1.msra.mxu0 0.0
    %1089 = vmatprep.subr.mxu0 0.0
    %1090 = vmatpush1.msra.mxu0 0.0
    %1091 = vmatprep.subr.mxu0 0.0
    %1092 = vmatpush1.msra.mxu0 0.0
    %1093 = vmatprep.subr.mxu0 0.0
    %1094 = vmatpush1.msra.mxu0 0.0
    %1095 = vmatprep.mubr.f32.mxu0 0.0
    %1096 = vmatmul.mubr.f32.gmra.mrb[0].mxu0 %v1029
    %v1097 = vpop.f32.mrb[0].mxu0
    %v1098 = vadd.f32 0.0, %v1097
    %v1099 = vpop.f32.mrb[0].mxu0
    %1100 = vdwg.mxu0
    %v1102 = vrot.slane %v1098, 2
    %v1104 = vadd.f32 %v386, %v1102
    %v1105 = vxor.u32 %v1104, 2147483648
    %v1106 = vmul.f32 %v1105, 1.442695
    %v1107 = vpow.pop %v1106
    %v1108 = vadd.f32 %v1107, 1.0
    %v1109 = vrcp.pop %v1108
    %v1110 = vmul.f32 1.0, %v1109
    %v1111 = vtanh.pop %v1104
    %v1113 = vrot.slane %v911, 6
    %v1115 = vmul.f32 %v1110, %v1113
    %1117 = vrot.lane.b32.xlu0 %v1111, 64
    %v1118 = vpop.permute.xlu0 %1117
    %v1120 = vmul.f32 %v1110, %v1118
    %1122 = vrot.lane.b32.xlu0 %v1120, 32
    %v1123 = vpop.permute.xlu0 %1122
    %v1125 = vadd.f32 %v1115, %v1123
    %v1126 = vtanh.pop %v1125
    %1128 = vrot.lane.b32.xlu0 %v1126, 64
    %v1129 = vpop.permute.xlu0 %1128
    %v1131 = vmul.f32 %v1110, %v1129
    %1133 = vrot.lane.b32.xlu0 %v1131, 32
    %v1134 = vpop.permute.xlu0 %1133
    %v1137 = vrot.slane %v1025, 2
    %1138 = vrot.lane.b32.xlu0 %v1137, 64
    %v1139 = vpop.permute.xlu0 %1138
    %v1141 = vsel %vm312, %v1134, %v1139
    %v1143 = vrot.slane %v1141, 6
    %v1144 = vsel %vm503, %v1143, 0
    %1146 = vmatprep.subr.mxu0 0.0
    %1147 = vmatpush1.msra.mxu0 %v47
    %1148 = vmatprep.subr.mxu0 0.0
    %1149 = vmatpush1.msra.mxu0 %v48
    %1150 = vmatprep.subr.mxu0 0.0
    %1151 = vmatpush1.msra.mxu0 %v49
    %1152 = vmatprep.subr.mxu0 0.0
    %1153 = vmatpush1.msra.mxu0 %v50
    %1154 = vmatprep.subr.mxu0 0.0
    %1155 = vmatpush1.msra.mxu0 %v51
    %1156 = vmatprep.subr.mxu0 0.0
    %1157 = vmatpush1.msra.mxu0 %v52
    %1158 = vmatprep.subr.mxu0 0.0
    %1159 = vmatpush1.msra.mxu0 %v53
    %1160 = vmatprep.subr.mxu0 0.0
    %1161 = vmatpush1.msra.mxu0 %v54
    %1162 = vmatprep.subr.mxu0 0.0
    %1163 = vmatpush1.msra.mxu0 0.0
    %1164 = vmatprep.subr.mxu0 0.0
    %1165 = vmatpush1.msra.mxu0 0.0
    %1166 = vmatprep.subr.mxu0 0.0
    %1167 = vmatpush1.msra.mxu0 0.0
    %1168 = vmatprep.subr.mxu0 0.0
    %1169 = vmatpush1.msra.mxu0 0.0
    %1170 = vmatprep.subr.mxu0 0.0
    %1171 = vmatpush1.msra.mxu0 0.0
    %1172 = vmatprep.subr.mxu0 0.0
    %1173 = vmatpush1.msra.mxu0 0.0
    %1174 = vmatprep.subr.mxu0 0.0
    %1175 = vmatpush1.msra.mxu0 0.0
    %1176 = vmatprep.subr.mxu0 0.0
    %1177 = vmatpush1.msra.mxu0 0.0
    %1178 = vmatprep.subr.mxu0 0.0
    %1179 = vmatpush1.msra.mxu0 0.0
    %1180 = vmatprep.subr.mxu0 0.0
    %1181 = vmatpush1.msra.mxu0 0.0
    %1182 = vmatprep.subr.mxu0 0.0
    %1183 = vmatpush1.msra.mxu0 0.0
    %1184 = vmatprep.subr.mxu0 0.0
    %1185 = vmatpush1.msra.mxu0 0.0
    %1186 = vmatprep.subr.mxu0 0.0
    %1187 = vmatpush1.msra.mxu0 0.0
    %1188 = vmatprep.subr.mxu0 0.0
    %1189 = vmatpush1.msra.mxu0 0.0
    %1190 = vmatprep.subr.mxu0 0.0
    %1191 = vmatpush1.msra.mxu0 0.0
    %1192 = vmatprep.subr.mxu0 0.0
    %1193 = vmatpush1.msra.mxu0 0.0
    %1194 = vmatprep.subr.mxu0 0.0
    %1195 = vmatpush1.msra.mxu0 0.0
    %1196 = vmatprep.subr.mxu0 0.0
    %1197 = vmatpush1.msra.mxu0 0.0
    %1198 = vmatprep.subr.mxu0 0.0
    %1199 = vmatpush1.msra.mxu0 0.0
    %1200 = vmatprep.subr.mxu0 0.0
    %1201 = vmatpush1.msra.mxu0 0.0
    %1202 = vmatprep.subr.mxu0 0.0
    %1203 = vmatpush1.msra.mxu0 0.0
    %1204 = vmatprep.subr.mxu0 0.0
    %1205 = vmatpush1.msra.mxu0 0.0
    %1206 = vmatprep.subr.mxu0 0.0
    %1207 = vmatpush1.msra.mxu0 0.0
    %1208 = vmatprep.subr.mxu0 0.0
    %1209 = vmatpush1.msra.mxu0 0.0
    %1210 = vmatprep.mubr.f32.mxu0 0.0
    %1211 = vmatmul.mubr.f32.gmra.mrb[0].mxu0 %v1144
    %v1212 = vpop.f32.mrb[0].mxu0
    %v1213 = vadd.f32 %v501, %v1212
    %v1214 = vpop.f32.mrb[0].mxu0
    %1215 = vdwg.mxu0
    %v1216 = vxor.u32 %v1213, 2147483648
    %v1217 = vmul.f32 %v1216, 1.442695
    %v1218 = vpow.pop %v1217
    %v1219 = vadd.f32 %v1218, 1.0
    %v1220 = vrcp.pop %v1219
    %v1221 = vmul.f32 1.0, %v1220
    %v1222 = vtanh.pop %v1213
    %v1223 = vmul.f32 %v1221, %v1019
    %1225 = vrot.lane.b32.xlu0 %v1222, 64
    %v1226 = vpop.permute.xlu0 %1225
    %v1228 = vmul.f32 %v1221, %v1226
    %1230 = vrot.lane.b32.xlu0 %v1228, 32
    %v1231 = vpop.permute.xlu0 %1230
    %v1233 = vadd.f32 %v1223, %v1231
    %v1234 = vtanh.pop %v1233
    %1236 = vrot.lane.b32.xlu0 %v1234, 64
    %v1237 = vpop.permute.xlu0 %1236
    %v1239 = vmul.f32 %v1221, %v1237
    %v1240 = vrot.slane %v1131, 6
    %1241 = vrot.lane.b32.xlu0 %v1240, 32
    %v1242 = vpop.permute.xlu0 %1241
    %v1243 = vsel %vm312, %v1242, 0
    %1245 = vmatprep.subr.mxu0 0.0
    %1246 = vmatpush1.msra.mxu0 %v42
    %1247 = vmatprep.subr.mxu0 0.0
    %1248 = vmatpush1.msra.mxu0 %v43
    %1249 = vmatprep.subr.mxu0 0.0
    %1250 = vmatpush1.msra.mxu0 %v44
    %1251 = vmatprep.subr.mxu0 0.0
    %1252 = vmatpush1.msra.mxu0 %v45
    %1253 = vmatprep.subr.mxu0 0.0
    %1254 = vmatpush1.msra.mxu0 0.0
    %1255 = vmatprep.subr.mxu0 0.0
    %1256 = vmatpush1.msra.mxu0 0.0
    %1257 = vmatprep.subr.mxu0 0.0
    %1258 = vmatpush1.msra.mxu0 0.0
    %1259 = vmatprep.subr.mxu0 0.0
    %1260 = vmatpush1.msra.mxu0 0.0
    %1261 = vmatprep.subr.mxu0 0.0
    %1262 = vmatpush1.msra.mxu0 0.0
    %1263 = vmatprep.subr.mxu0 0.0
    %1264 = vmatpush1.msra.mxu0 0.0
    %1265 = vmatprep.subr.mxu0 0.0
    %1266 = vmatpush1.msra.mxu0 0.0
    %1267 = vmatprep.subr.mxu0 0.0
    %1268 = vmatpush1.msra.mxu0 0.0
    %1269 = vmatprep.subr.mxu0 0.0
    %1270 = vmatpush1.msra.mxu0 0.0
    %1271 = vmatprep.subr.mxu0 0.0
    %1272 = vmatpush1.msra.mxu0 0.0
    %1273 = vmatprep.subr.mxu0 0.0
    %1274 = vmatpush1.msra.mxu0 0.0
    %1275 = vmatprep.subr.mxu0 0.0
    %1276 = vmatpush1.msra.mxu0 0.0
    %1277 = vmatprep.subr.mxu0 0.0
    %1278 = vmatpush1.msra.mxu0 0.0
    %1279 = vmatprep.subr.mxu0 0.0
    %1280 = vmatpush1.msra.mxu0 0.0
    %1281 = vmatprep.subr.mxu0 0.0
    %1282 = vmatpush1.msra.mxu0 0.0
    %1283 = vmatprep.subr.mxu0 0.0
    %1284 = vmatpush1.msra.mxu0 0.0
    %1285 = vmatprep.subr.mxu0 0.0
    %1286 = vmatpush1.msra.mxu0 0.0
    %1287 = vmatprep.subr.mxu0 0.0
    %1288 = vmatpush1.msra.mxu0 0.0
    %1289 = vmatprep.subr.mxu0 0.0
    %1290 = vmatpush1.msra.mxu0 0.0
    %1291 = vmatprep.subr.mxu0 0.0
    %1292 = vmatpush1.msra.mxu0 0.0
    %1293 = vmatprep.subr.mxu0 0.0
    %1294 = vmatpush1.msra.mxu0 0.0
    %1295 = vmatprep.subr.mxu0 0.0
    %1296 = vmatpush1.msra.mxu0 0.0
    %1297 = vmatprep.subr.mxu0 0.0
    %1298 = vmatpush1.msra.mxu0 0.0
    %1299 = vmatprep.subr.mxu0 0.0
    %1300 = vmatpush1.msra.mxu0 0.0
    %1301 = vmatprep.subr.mxu0 0.0
    %1302 = vmatpush1.msra.mxu0 0.0
    %1303 = vmatprep.subr.mxu0 0.0
    %1304 = vmatpush1.msra.mxu0 0.0
    %1305 = vmatprep.subr.mxu0 0.0
    %1306 = vmatpush1.msra.mxu0 0.0
    %1307 = vmatprep.subr.mxu0 0.0
    %1308 = vmatpush1.msra.mxu0 0.0
    %1309 = vmatprep.mubr.f32.mxu0 0.0
    %1310 = vmatmul.mubr.f32.gmra.mrb[0].mxu0 %v1243
    %v1311 = vpop.f32.mrb[0].mxu0
    %v1312 = vadd.f32 0.0, %v1311
    %v1313 = vpop.f32.mrb[0].mxu0
    %1314 = vdwg.mxu0
    %v1315 = vadd.f32 %v391, %v1312
    %v1316 = vxor.u32 %v1315, 2147483648
    %v1317 = vmul.f32 %v1316, 1.442695
    %v1318 = vpow.pop %v1317
    %v1319 = vadd.f32 %v1318, 1.0
    %v1320 = vrcp.pop %v1319
    %v1321 = vmul.f32 1.0, %v1320
    %v1322 = vtanh.pop %v1315
    %v1324 = vrot.slane %v1125, 6
    %v1326 = vmul.f32 %v1321, %v1324
    %1328 = vrot.lane.b32.xlu0 %v1322, 64
    %v1329 = vpop.permute.xlu0 %1328
    %v1331 = vmul.f32 %v1321, %v1329
    %1333 = vrot.lane.b32.xlu0 %v1331, 32
    %v1334 = vpop.permute.xlu0 %1333
    %v1336 = vadd.f32 %v1326, %v1334
    %v1337 = vtanh.pop %v1336
    %1339 = vrot.lane.b32.xlu0 %v1337, 64
    %v1340 = vpop.permute.xlu0 %1339
    %v1342 = vmul.f32 %v1321, %v1340
    %1344 = vrot.lane.b32.xlu0 %v1342, 32
    %v1345 = vpop.permute.xlu0 %1344
    %1348 = vrot.lane.b32.xlu0 %v1239, 64
    %v1349 = vpop.permute.xlu0 %1348
    %v1351 = vsel %vm312, %v1345, %v1349
    %v1353 = vsel %vm503, %v1351, 0
    %1355 = vmatprep.subr.mxu0 0.0
    %1356 = vmatpush1.msra.mxu0 %v47
    %1357 = vmatprep.subr.mxu0 0.0
    %1358 = vmatpush1.msra.mxu0 %v48
    %1359 = vmatprep.subr.mxu0 0.0
    %1360 = vmatpush1.msra.mxu0 %v49
    %1361 = vmatprep.subr.mxu0 0.0
    %1362 = vmatpush1.msra.mxu0 %v50
    %1363 = vmatprep.subr.mxu0 0.0
    %1364 = vmatpush1.msra.mxu0 %v51
    %1365 = vmatprep.subr.mxu0 0.0
    %1366 = vmatpush1.msra.mxu0 %v52
    %1367 = vmatprep.subr.mxu0 0.0
    %1368 = vmatpush1.msra.mxu0 %v53
    %1369 = vmatprep.subr.mxu0 0.0
    %1370 = vmatpush1.msra.mxu0 %v54
    %1371 = vmatprep.subr.mxu0 0.0
    %1372 = vmatpush1.msra.mxu0 0.0
    %1373 = vmatprep.subr.mxu0 0.0
    %1374 = vmatpush1.msra.mxu0 0.0
    %1375 = vmatprep.subr.mxu0 0.0
    %1376 = vmatpush1.msra.mxu0 0.0
    %1377 = vmatprep.subr.mxu0 0.0
    %1378 = vmatpush1.msra.mxu0 0.0
    %1379 = vmatprep.subr.mxu0 0.0
    %1380 = vmatpush1.msra.mxu0 0.0
    %1381 = vmatprep.subr.mxu0 0.0
    %1382 = vmatpush1.msra.mxu0 0.0
    %1383 = vmatprep.subr.mxu0 0.0
    %1384 = vmatpush1.msra.mxu0 0.0
    %1385 = vmatprep.subr.mxu0 0.0
    %1386 = vmatpush1.msra.mxu0 0.0
    %1387 = vmatprep.subr.mxu0 0.0
    %1388 = vmatpush1.msra.mxu0 0.0
    %1389 = vmatprep.subr.mxu0 0.0
    %1390 = vmatpush1.msra.mxu0 0.0
    %1391 = vmatprep.subr.mxu0 0.0
    %1392 = vmatpush1.msra.mxu0 0.0
    %1393 = vmatprep.subr.mxu0 0.0
    %1394 = vmatpush1.msra.mxu0 0.0
    %1395 = vmatprep.subr.mxu0 0.0
    %1396 = vmatpush1.msra.mxu0 0.0
    %1397 = vmatprep.subr.mxu0 0.0
    %1398 = vmatpush1.msra.mxu0 0.0
    %1399 = vmatprep.subr.mxu0 0.0
    %1400 = vmatpush1.msra.mxu0 0.0
    %1401 = vmatprep.subr.mxu0 0.0
    %1402 = vmatpush1.msra.mxu0 0.0
    %1403 = vmatprep.subr.mxu0 0.0
    %1404 = vmatpush1.msra.mxu0 0.0
    %1405 = vmatprep.subr.mxu0 0.0
    %1406 = vmatpush1.msra.mxu0 0.0
    %1407 = vmatprep.subr.mxu0 0.0
    %1408 = vmatpush1.msra.mxu0 0.0
    %1409 = vmatprep.subr.mxu0 0.0
    %1410 = vmatpush1.msra.mxu0 0.0
    %1411 = vmatprep.subr.mxu0 0.0
    %1412 = vmatpush1.msra.mxu0 0.0
    %1413 = vmatprep.subr.mxu0 0.0
    %1414 = vmatpush1.msra.mxu0 0.0
    %1415 = vmatprep.subr.mxu0 0.0
    %1416 = vmatpush1.msra.mxu0 0.0
    %1417 = vmatprep.subr.mxu0 0.0
    %1418 = vmatpush1.msra.mxu0 0.0
    %1419 = vmatprep.mubr.f32.mxu0 0.0
    %1420 = vmatmul.mubr.f32.gmra.mrb[0].mxu0 %v1353
    %v1421 = vpop.f32.mrb[0].mxu0
    %v1422 = vadd.f32 %v501, %v1421
    %v1423 = vpop.f32.mrb[0].mxu0
    %1424 = vdwg.mxu0
    %v1425 = vxor.u32 %v1422, 2147483648
    %v1426 = vmul.f32 %v1425, 1.442695
    %v1427 = vpow.pop %v1426
    %v1428 = vadd.f32 %v1427, 1.0
    %v1429 = vrcp.pop %v1428
    %v1430 = vmul.f32 1.0, %v1429
    %v1431 = vtanh.pop %v1422
    %v1432 = vmul.f32 %v1430, %v1233
    %1434 = vrot.lane.b32.xlu0 %v1431, 64
    %v1435 = vpop.permute.xlu0 %1434
    %v1437 = vmul.f32 %v1430, %v1435
    %1439 = vrot.lane.b32.xlu0 %v1437, 32
    %v1440 = vpop.permute.xlu0 %1439
    %v1442 = vadd.f32 %v1432, %v1440
    %v1443 = vtanh.pop %v1442
    %1445 = vrot.lane.b32.xlu0 %v1443, 64
    %v1446 = vpop.permute.xlu0 %1445
    %v1448 = vmul.f32 %v1430, %v1446
    %v1449 = vsel %vm312, %v1345, 0
    %1451 = vmatprep.subr.mxu0 0.0
    %1452 = vmatpush1.msra.mxu0 %v42
    %1453 = vmatprep.subr.mxu0 0.0
    %1454 = vmatpush1.msra.mxu0 %v43
    %1455 = vmatprep.subr.mxu0 0.0
    %1456 = vmatpush1.msra.mxu0 %v44
    %1457 = vmatprep.subr.mxu0 0.0
    %1458 = vmatpush1.msra.mxu0 %v45
    %1459 = vmatprep.subr.mxu0 0.0
    %1460 = vmatpush1.msra.mxu0 0.0
    %1461 = vmatprep.subr.mxu0 0.0
    %1462 = vmatpush1.msra.mxu0 0.0
    %1463 = vmatprep.subr.mxu0 0.0
    %1464 = vmatpush1.msra.mxu0 0.0
    %1465 = vmatprep.subr.mxu0 0.0
    %1466 = vmatpush1.msra.mxu0 0.0
    %1467 = vmatprep.subr.mxu0 0.0
    %1468 = vmatpush1.msra.mxu0 0.0
    %1469 = vmatprep.subr.mxu0 0.0
    %1470 = vmatpush1.msra.mxu0 0.0
    %1471 = vmatprep.subr.mxu0 0.0
    %1472 = vmatpush1.msra.mxu0 0.0
    %1473 = vmatprep.subr.mxu0 0.0
    %1474 = vmatpush1.msra.mxu0 0.0
    %1475 = vmatprep.subr.mxu0 0.0
    %1476 = vmatpush1.msra.mxu0 0.0
    %1477 = vmatprep.subr.mxu0 0.0
    %1478 = vmatpush1.msra.mxu0 0.0
    %1479 = vmatprep.subr.mxu0 0.0
    %1480 = vmatpush1.msra.mxu0 0.0
    %1481 = vmatprep.subr.mxu0 0.0
    %1482 = vmatpush1.msra.mxu0 0.0
    %1483 = vmatprep.subr.mxu0 0.0
    %1484 = vmatpush1.msra.mxu0 0.0
    %1485 = vmatprep.subr.mxu0 0.0
    %1486 = vmatpush1.msra.mxu0 0.0
    %1487 = vmatprep.subr.mxu0 0.0
    %1488 = vmatpush1.msra.mxu0 0.0
    %1489 = vmatprep.subr.mxu0 0.0
    %1490 = vmatpush1.msra.mxu0 0.0
    %1491 = vmatprep.subr.mxu0 0.0
    %1492 = vmatpush1.msra.mxu0 0.0
    %1493 = vmatprep.subr.mxu0 0.0
    %1494 = vmatpush1.msra.mxu0 0.0
    %1495 = vmatprep.subr.mxu0 0.0
    %1496 = vmatpush1.msra.mxu0 0.0
    %1497 = vmatprep.subr.mxu0 0.0
    %1498 = vmatpush1.msra.mxu0 0.0
    %1499 = vmatprep.subr.mxu0 0.0
    %1500 = vmatpush1.msra.mxu0 0.0
    %1501 = vmatprep.subr.mxu0 0.0
    %1502 = vmatpush1.msra.mxu0 0.0
    %1503 = vmatprep.subr.mxu0 0.0
    %1504 = vmatpush1.msra.mxu0 0.0
    %1505 = vmatprep.subr.mxu0 0.0
    %1506 = vmatpush1.msra.mxu0 0.0
    %1507 = vmatprep.subr.mxu0 0.0
    %1508 = vmatpush1.msra.mxu0 0.0
    %1509 = vmatprep.subr.mxu0 0.0
    %1510 = vmatpush1.msra.mxu0 0.0
    %1511 = vmatprep.subr.mxu0 0.0
    %1512 = vmatpush1.msra.mxu0 0.0
    %1513 = vmatprep.subr.mxu0 0.0
    %1514 = vmatpush1.msra.mxu0 0.0
    %1515 = vmatprep.mubr.f32.mxu0 0.0
    %1516 = vmatmul.mubr.f32.gmra.mrb[0].mxu0 %v1449
    %v1517 = vpop.f32.mrb[0].mxu0
    %v1518 = vadd.f32 0.0, %v1517
    %v1519 = vpop.f32.mrb[0].mxu0
    %1520 = vdwg.mxu0
    %v1522 = vrot.slane %v1518, 6
    %v1524 = vadd.f32 %v391, %v1522
    %v1525 = vxor.u32 %v1524, 2147483648
    %v1526 = vmul.f32 %v1525, 1.442695
    %v1527 = vpow.pop %v1526
    %v1528 = vadd.f32 %v1527, 1.0
    %v1529 = vrcp.pop %v1528
    %v1530 = vmul.f32 1.0, %v1529
    %v1531 = vtanh.pop %v1524
    %v1533 = vrot.slane %v1336, 6
    %v1535 = vmul.f32 %v1530, %v1533
    %1537 = vrot.lane.b32.xlu0 %v1531, 64
    %v1538 = vpop.permute.xlu0 %1537
    %v1540 = vmul.f32 %v1530, %v1538
    %1542 = vrot.lane.b32.xlu0 %v1540, 32
    %v1543 = vpop.permute.xlu0 %1542
    %v1545 = vadd.f32 %v1535, %v1543
    %v1546 = vtanh.pop %v1545
    %1548 = vrot.lane.b32.xlu0 %v1546, 64
    %v1549 = vpop.permute.xlu0 %1548
    %v1551 = vmul.f32 %v1530, %v1549
    %1553 = vrot.lane.b32.xlu0 %v1551, 32
    %v1554 = vpop.permute.xlu0 %1553
    %v1557 = vrot.slane %v1448, 6
    %1558 = vrot.lane.b32.xlu0 %v1557, 64
    %v1559 = vpop.permute.xlu0 %1558
    %v1561 = vsel %vm312, %v1554, %v1559
    %v1563 = vrot.slane %v1561, 2
    %v1564 = vsel %vm503, %v1563, 0
    %1566 = vmatprep.subr.mxu0 0.0
    %1567 = vmatpush1.msra.mxu0 %v47
    %1568 = vmatprep.subr.mxu0 0.0
    %1569 = vmatpush1.msra.mxu0 %v48
    %1570 = vmatprep.subr.mxu0 0.0
    %1571 = vmatpush1.msra.mxu0 %v49
    %1572 = vmatprep.subr.mxu0 0.0
    %1573 = vmatpush1.msra.mxu0 %v50
    %1574 = vmatprep.subr.mxu0 0.0
    %1575 = vmatpush1.msra.mxu0 %v51
    %1576 = vmatprep.subr.mxu0 0.0
    %1577 = vmatpush1.msra.mxu0 %v52
    %1578 = vmatprep.subr.mxu0 0.0
    %1579 = vmatpush1.msra.mxu0 %v53
    %1580 = vmatprep.subr.mxu0 0.0
    %1581 = vmatpush1.msra.mxu0 %v54
    %1582 = vmatprep.subr.mxu0 0.0
    %1583 = vmatpush1.msra.mxu0 0.0
    %1584 = vmatprep.subr.mxu0 0.0
    %1585 = vmatpush1.msra.mxu0 0.0
    %1586 = vmatprep.subr.mxu0 0.0
    %1587 = vmatpush1.msra.mxu0 0.0
    %1588 = vmatprep.subr.mxu0 0.0
    %1589 = vmatpush1.msra.mxu0 0.0
    %1590 = vmatprep.subr.mxu0 0.0
    %1591 = vmatpush1.msra.mxu0 0.0
    %1592 = vmatprep.subr.mxu0 0.0
    %1593 = vmatpush1.msra.mxu0 0.0
    %1594 = vmatprep.subr.mxu0 0.0
    %1595 = vmatpush1.msra.mxu0 0.0
    %1596 = vmatprep.subr.mxu0 0.0
    %1597 = vmatpush1.msra.mxu0 0.0
    %1598 = vmatprep.subr.mxu0 0.0
    %1599 = vmatpush1.msra.mxu0 0.0
    %1600 = vmatprep.subr.mxu0 0.0
    %1601 = vmatpush1.msra.mxu0 0.0
    %1602 = vmatprep.subr.mxu0 0.0
    %1603 = vmatpush1.msra.mxu0 0.0
    %1604 = vmatprep.subr.mxu0 0.0
    %1605 = vmatpush1.msra.mxu0 0.0
    %1606 = vmatprep.subr.mxu0 0.0
    %1607 = vmatpush1.msra.mxu0 0.0
    %1608 = vmatprep.subr.mxu0 0.0
    %1609 = vmatpush1.msra.mxu0 0.0
    %1610 = vmatprep.subr.mxu0 0.0
    %1611 = vmatpush1.msra.mxu0 0.0
    %1612 = vmatprep.subr.mxu0 0.0
    %1613 = vmatpush1.msra.mxu0 0.0
    %1614 = vmatprep.subr.mxu0 0.0
    %1615 = vmatpush1.msra.mxu0 0.0
    %1616 = vmatprep.subr.mxu0 0.0
    %1617 = vmatpush1.msra.mxu0 0.0
    %1618 = vmatprep.subr.mxu0 0.0
    %1619 = vmatpush1.msra.mxu0 0.0
    %1620 = vmatprep.subr.mxu0 0.0
    %1621 = vmatpush1.msra.mxu0 0.0
    %1622 = vmatprep.subr.mxu0 0.0
    %1623 = vmatpush1.msra.mxu0 0.0
    %1624 = vmatprep.subr.mxu0 0.0
    %1625 = vmatpush1.msra.mxu0 0.0
    %1626 = vmatprep.subr.mxu0 0.0
    %1627 = vmatpush1.msra.mxu0 0.0
    %1628 = vmatprep.subr.mxu0 0.0
    %1629 = vmatpush1.msra.mxu0 0.0
    %1630 = vmatprep.mubr.f32.mxu0 0.0
    %1631 = vmatmul.mubr.f32.gmra.mrb[0].mxu0 %v1564
    %v1632 = vpop.f32.mrb[0].mxu0
    %v1633 = vadd.f32 %v501, %v1632
    %v1634 = vpop.f32.mrb[0].mxu0
    %1635 = vdwg.mxu0
    %v1636 = vxor.u32 %v1633, 2147483648
    %v1637 = vmul.f32 %v1636, 1.442695
    %v1638 = vpow.pop %v1637
    %v1639 = vadd.f32 %v1638, 1.0
    %v1640 = vrcp.pop %v1639
    %v1641 = vmul.f32 1.0, %v1640
    %v1642 = vtanh.pop %v1633
    %v1643 = vmul.f32 %v1641, %v1442
    %1645 = vrot.lane.b32.xlu0 %v1642, 64
    %v1646 = vpop.permute.xlu0 %1645
    %v1648 = vmul.f32 %v1641, %v1646
    %1650 = vrot.lane.b32.xlu0 %v1648, 32
    %v1651 = vpop.permute.xlu0 %1650
    %v1653 = vadd.f32 %v1643, %v1651
    %v1654 = vtanh.pop %v1653
    %1656 = vrot.lane.b32.xlu0 %v1654, 64
    %v1657 = vpop.permute.xlu0 %1656
    %v1659 = vmul.f32 %v1641, %v1657
    %v1660 = vrot.slane %v1551, 2
    %1661 = vrot.lane.b32.xlu0 %v1660, 32
    %v1662 = vpop.permute.xlu0 %1661
    %v1663 = vsel %vm312, %v1662, 0
    %1665 = vmatprep.subr.mxu0 0.0
    %1666 = vmatpush1.msra.mxu0 %v42
    %1667 = vmatprep.subr.mxu0 0.0
    %1668 = vmatpush1.msra.mxu0 %v43
    %1669 = vmatprep.subr.mxu0 0.0
    %1670 = vmatpush1.msra.mxu0 %v44
    %1671 = vmatprep.subr.mxu0 0.0
    %1672 = vmatpush1.msra.mxu0 %v45
    %1673 = vmatprep.subr.mxu0 0.0
    %1674 = vmatpush1.msra.mxu0 0.0
    %1675 = vmatprep.subr.mxu0 0.0
    %1676 = vmatpush1.msra.mxu0 0.0
    %1677 = vmatprep.subr.mxu0 0.0
    %1678 = vmatpush1.msra.mxu0 0.0
    %1679 = vmatprep.subr.mxu0 0.0
    %1680 = vmatpush1.msra.mxu0 0.0
    %1681 = vmatprep.subr.mxu0 0.0
    %1682 = vmatpush1.msra.mxu0 0.0
    %1683 = vmatprep.subr.mxu0 0.0
    %1684 = vmatpush1.msra.mxu0 0.0
    %1685 = vmatprep.subr.mxu0 0.0
    %1686 = vmatpush1.msra.mxu0 0.0
    %1687 = vmatprep.subr.mxu0 0.0
    %1688 = vmatpush1.msra.mxu0 0.0
    %1689 = vmatprep.subr.mxu0 0.0
    %1690 = vmatpush1.msra.mxu0 0.0
    %1691 = vmatprep.subr.mxu0 0.0
    %1692 = vmatpush1.msra.mxu0 0.0
    %1693 = vmatprep.subr.mxu0 0.0
    %1694 = vmatpush1.msra.mxu0 0.0
    %1695 = vmatprep.subr.mxu0 0.0
    %1696 = vmatpush1.msra.mxu0 0.0
    %1697 = vmatprep.subr.mxu0 0.0
    %1698 = vmatpush1.msra.mxu0 0.0
    %1699 = vmatprep.subr.mxu0 0.0
    %1700 = vmatpush1.msra.mxu0 0.0
    %1701 = vmatprep.subr.mxu0 0.0
    %1702 = vmatpush1.msra.mxu0 0.0
    %1703 = vmatprep.subr.mxu0 0.0
    %1704 = vmatpush1.msra.mxu0 0.0
    %1705 = vmatprep.subr.mxu0 0.0
    %1706 = vmatpush1.msra.mxu0 0.0
    %1707 = vmatprep.subr.mxu0 0.0
    %1708 = vmatpush1.msra.mxu0 0.0
    %1709 = vmatprep.subr.mxu0 0.0
    %1710 = vmatpush1.msra.mxu0 0.0
    %1711 = vmatprep.subr.mxu0 0.0
    %1712 = vmatpush1.msra.mxu0 0.0
    %1713 = vmatprep.subr.mxu0 0.0
    %1714 = vmatpush1.msra.mxu0 0.0
    %1715 = vmatprep.subr.mxu0 0.0
    %1716 = vmatpush1.msra.mxu0 0.0
    %1717 = vmatprep.subr.mxu0 0.0
    %1718 = vmatpush1.msra.mxu0 0.0
    %1719 = vmatprep.subr.mxu0 0.0
    %1720 = vmatpush1.msra.mxu0 0.0
    %1721 = vmatprep.subr.mxu0 0.0
    %1722 = vmatpush1.msra.mxu0 0.0
    %1723 = vmatprep.subr.mxu0 0.0
    %1724 = vmatpush1.msra.mxu0 0.0
    %1725 = vmatprep.subr.mxu0 0.0
    %1726 = vmatpush1.msra.mxu0 0.0
    %1727 = vmatprep.subr.mxu0 0.0
    %1728 = vmatpush1.msra.mxu0 0.0
    %1729 = vmatprep.mubr.f32.mxu0 0.0
    %1730 = vmatmul.mubr.f32.gmra.mrb[0].mxu0 %v1663
    %v1731 = vpop.f32.mrb[0].mxu0
    %v1732 = vadd.f32 0.0, %v1731
    %v1733 = vpop.f32.mrb[0].mxu0
    %1734 = vdwg.mxu0
    %v1736 = vrot.slane %v1732, 4
    %v1738 = vadd.f32 %v391, %v1736
    %v1739 = vxor.u32 %v1738, 2147483648
    %v1740 = vmul.f32 %v1739, 1.442695
    %v1741 = vpow.pop %v1740
    %v1742 = vadd.f32 %v1741, 1.0
    %v1743 = vrcp.pop %v1742
    %v1744 = vmul.f32 1.0, %v1743
    %v1745 = vtanh.pop %v1738
    %v1747 = vrot.slane %v1545, 6
    %v1749 = vmul.f32 %v1744, %v1747
    %1751 = vrot.lane.b32.xlu0 %v1745, 64
    %v1752 = vpop.permute.xlu0 %1751
    %v1754 = vmul.f32 %v1744, %v1752
    %1756 = vrot.lane.b32.xlu0 %v1754, 32
    %v1757 = vpop.permute.xlu0 %1756
    %v1759 = vadd.f32 %v1749, %v1757
    %v1760 = vtanh.pop %v1759
    %1762 = vrot.lane.b32.xlu0 %v1760, 64
    %v1763 = vpop.permute.xlu0 %1762
    %v1765 = vmul.f32 %v1744, %v1763
    %1767 = vrot.lane.b32.xlu0 %v1765, 32
    %v1768 = vpop.permute.xlu0 %1767
    %v1771 = vrot.slane %v1659, 4
    %1772 = vrot.lane.b32.xlu0 %v1771, 64
    %v1773 = vpop.permute.xlu0 %1772
    %v1775 = vsel %vm312, %v1768, %v1773
    %v1777 = vrot.slane %v1775, 4
    %v1778 = vsel %vm503, %v1777, 0
    %1780 = vmatprep.subr.mxu0 0.0
    %1781 = vmatpush1.msra.mxu0 %v47
    %1782 = vmatprep.subr.mxu0 0.0
    %1783 = vmatpush1.msra.mxu0 %v48
    %1784 = vmatprep.subr.mxu0 0.0
    %1785 = vmatpush1.msra.mxu0 %v49
    %1786 = vmatprep.subr.mxu0 0.0
    %1787 = vmatpush1.msra.mxu0 %v50
    %1788 = vmatprep.subr.mxu0 0.0
    %1789 = vmatpush1.msra.mxu0 %v51
    %1790 = vmatprep.subr.mxu0 0.0
    %1791 = vmatpush1.msra.mxu0 %v52
    %1792 = vmatprep.subr.mxu0 0.0
    %1793 = vmatpush1.msra.mxu0 %v53
    %1794 = vmatprep.subr.mxu0 0.0
    %1795 = vmatpush1.msra.mxu0 %v54
    %1796 = vmatprep.subr.mxu0 0.0
    %1797 = vmatpush1.msra.mxu0 0.0
    %1798 = vmatprep.subr.mxu0 0.0
    %1799 = vmatpush1.msra.mxu0 0.0
    %1800 = vmatprep.subr.mxu0 0.0
    %1801 = vmatpush1.msra.mxu0 0.0
    %1802 = vmatprep.subr.mxu0 0.0
    %1803 = vmatpush1.msra.mxu0 0.0
    %1804 = vmatprep.subr.mxu0 0.0
    %1805 = vmatpush1.msra.mxu0 0.0
    %1806 = vmatprep.subr.mxu0 0.0
    %1807 = vmatpush1.msra.mxu0 0.0
    %1808 = vmatprep.subr.mxu0 0.0
    %1809 = vmatpush1.msra.mxu0 0.0
    %1810 = vmatprep.subr.mxu0 0.0
    %1811 = vmatpush1.msra.mxu0 0.0
    %1812 = vmatprep.subr.mxu0 0.0
    %1813 = vmatpush1.msra.mxu0 0.0
    %1814 = vmatprep.subr.mxu0 0.0
    %1815 = vmatpush1.msra.mxu0 0.0
    %1816 = vmatprep.subr.mxu0 0.0
    %1817 = vmatpush1.msra.mxu0 0.0
    %1818 = vmatprep.subr.mxu0 0.0
    %1819 = vmatpush1.msra.mxu0 0.0
    %1820 = vmatprep.subr.mxu0 0.0
    %1821 = vmatpush1.msra.mxu0 0.0
    %1822 = vmatprep.subr.mxu0 0.0
    %1823 = vmatpush1.msra.mxu0 0.0
    %1824 = vmatprep.subr.mxu0 0.0
    %1825 = vmatpush1.msra.mxu0 0.0
    %1826 = vmatprep.subr.mxu0 0.0
    %1827 = vmatpush1.msra.mxu0 0.0
    %1828 = vmatprep.subr.mxu0 0.0
    %1829 = vmatpush1.msra.mxu0 0.0
    %1830 = vmatprep.subr.mxu0 0.0
    %1831 = vmatpush1.msra.mxu0 0.0
    %1832 = vmatprep.subr.mxu0 0.0
    %1833 = vmatpush1.msra.mxu0 0.0
    %1834 = vmatprep.subr.mxu0 0.0
    %1835 = vmatpush1.msra.mxu0 0.0
    %1836 = vmatprep.subr.mxu0 0.0
    %1837 = vmatpush1.msra.mxu0 0.0
    %1838 = vmatprep.subr.mxu0 0.0
    %1839 = vmatpush1.msra.mxu0 0.0
    %1840 = vmatprep.subr.mxu0 0.0
    %1841 = vmatpush1.msra.mxu0 0.0
    %1842 = vmatprep.subr.mxu0 0.0
    %1843 = vmatpush1.msra.mxu0 0.0
    %1844 = vmatprep.mubr.f32.mxu0 0.0
    %1845 = vmatmul.mubr.f32.gmra.mrb[0].mxu0 %v1778
    %v1846 = vpop.f32.mrb[0].mxu0
    %v1847 = vadd.f32 %v501, %v1846
    %v1848 = vpop.f32.mrb[0].mxu0
    %1849 = vdwg.mxu0
    %v1850 = vxor.u32 %v1847, 2147483648
    %v1851 = vmul.f32 %v1850, 1.442695
    %v1852 = vpow.pop %v1851
    %v1853 = vadd.f32 %v1852, 1.0
    %v1854 = vrcp.pop %v1853
    %v1855 = vmul.f32 1.0, %v1854
    %v1856 = vtanh.pop %v1847
    %v1857 = vmul.f32 %v1855, %v1653
    %1859 = vrot.lane.b32.xlu0 %v1856, 64
    %v1860 = vpop.permute.xlu0 %1859
    %v1862 = vmul.f32 %v1855, %v1860
    %1864 = vrot.lane.b32.xlu0 %v1862, 32
    %v1865 = vpop.permute.xlu0 %1864
    %v1867 = vadd.f32 %v1857, %v1865
    %v1868 = vtanh.pop %v1867
    %1870 = vrot.lane.b32.xlu0 %v1868, 64
    %v1871 = vpop.permute.xlu0 %1870
    %v1873 = vmul.f32 %v1855, %v1871
    %v1874 = vrot.slane %v1765, 4
    %1875 = vrot.lane.b32.xlu0 %v1874, 32
    %v1876 = vpop.permute.xlu0 %1875
    %v1877 = vsel %vm312, %v1876, 0
    %1879 = vmatprep.subr.mxu0 0.0
    %1880 = vmatpush1.msra.mxu0 %v42
    %1881 = vmatprep.subr.mxu0 0.0
    %1882 = vmatpush1.msra.mxu0 %v43
    %1883 = vmatprep.subr.mxu0 0.0
    %1884 = vmatpush1.msra.mxu0 %v44
    %1885 = vmatprep.subr.mxu0 0.0
    %1886 = vmatpush1.msra.mxu0 %v45
    %1887 = vmatprep.subr.mxu0 0.0
    %1888 = vmatpush1.msra.mxu0 0.0
    %1889 = vmatprep.subr.mxu0 0.0
    %1890 = vmatpush1.msra.mxu0 0.0
    %1891 = vmatprep.subr.mxu0 0.0
    %1892 = vmatpush1.msra.mxu0 0.0
    %1893 = vmatprep.subr.mxu0 0.0
    %1894 = vmatpush1.msra.mxu0 0.0
    %1895 = vmatprep.subr.mxu0 0.0
    %1896 = vmatpush1.msra.mxu0 0.0
    %1897 = vmatprep.subr.mxu0 0.0
    %1898 = vmatpush1.msra.mxu0 0.0
    %1899 = vmatprep.subr.mxu0 0.0
    %1900 = vmatpush1.msra.mxu0 0.0
    %1901 = vmatprep.subr.mxu0 0.0
    %1902 = vmatpush1.msra.mxu0 0.0
    %1903 = vmatprep.subr.mxu0 0.0
    %1904 = vmatpush1.msra.mxu0 0.0
    %1905 = vmatprep.subr.mxu0 0.0
    %1906 = vmatpush1.msra.mxu0 0.0
    %1907 = vmatprep.subr.mxu0 0.0
    %1908 = vmatpush1.msra.mxu0 0.0
    %1909 = vmatprep.subr.mxu0 0.0
    %1910 = vmatpush1.msra.mxu0 0.0
    %1911 = vmatprep.subr.mxu0 0.0
    %1912 = vmatpush1.msra.mxu0 0.0
    %1913 = vmatprep.subr.mxu0 0.0
    %1914 = vmatpush1.msra.mxu0 0.0
    %1915 = vmatprep.subr.mxu0 0.0
    %1916 = vmatpush1.msra.mxu0 0.0
    %1917 = vmatprep.subr.mxu0 0.0
    %1918 = vmatpush1.msra.mxu0 0.0
    %1919 = vmatprep.subr.mxu0 0.0
    %1920 = vmatpush1.msra.mxu0 0.0
    %1921 = vmatprep.subr.mxu0 0.0
    %1922 = vmatpush1.msra.mxu0 0.0
    %1923 = vmatprep.subr.mxu0 0.0
    %1924 = vmatpush1.msra.mxu0 0.0
    %1925 = vmatprep.subr.mxu0 0.0
    %1926 = vmatpush1.msra.mxu0 0.0
    %1927 = vmatprep.subr.mxu0 0.0
    %1928 = vmatpush1.msra.mxu0 0.0
    %1929 = vmatprep.subr.mxu0 0.0
    %1930 = vmatpush1.msra.mxu0 0.0
    %1931 = vmatprep.subr.mxu0 0.0
    %1932 = vmatpush1.msra.mxu0 0.0
    %1933 = vmatprep.subr.mxu0 0.0
    %1934 = vmatpush1.msra.mxu0 0.0
    %1935 = vmatprep.subr.mxu0 0.0
    %1936 = vmatpush1.msra.mxu0 0.0
    %1937 = vmatprep.subr.mxu0 0.0
    %1938 = vmatpush1.msra.mxu0 0.0
    %1939 = vmatprep.subr.mxu0 0.0
    %1940 = vmatpush1.msra.mxu0 0.0
    %1941 = vmatprep.subr.mxu0 0.0
    %1942 = vmatpush1.msra.mxu0 0.0
    %1943 = vmatprep.mubr.f32.mxu0 0.0
    %1944 = vmatmul.mubr.f32.gmra.mrb[0].mxu0 %v1877
    %v1945 = vpop.f32.mrb[0].mxu0
    %v1946 = vadd.f32 0.0, %v1945
    %v1947 = vpop.f32.mrb[0].mxu0
    %1948 = vdwg.mxu0
    %v1950 = vrot.slane %v1946, 2
    %v1952 = vadd.f32 %v391, %v1950
    %v1953 = vxor.u32 %v1952, 2147483648
    %v1954 = vmul.f32 %v1953, 1.442695
    %v1955 = vpow.pop %v1954
    %v1956 = vadd.f32 %v1955, 1.0
    %v1957 = vrcp.pop %v1956
    %v1958 = vmul.f32 1.0, %v1957
    %v1959 = vtanh.pop %v1952
    %v1961 = vrot.slane %v1759, 6
    %v1963 = vmul.f32 %v1958, %v1961
    %1965 = vrot.lane.b32.xlu0 %v1959, 64
    %v1966 = vpop.permute.xlu0 %1965
    %v1968 = vmul.f32 %v1958, %v1966
    %1970 = vrot.lane.b32.xlu0 %v1968, 32
    %v1971 = vpop.permute.xlu0 %1970
    %v1973 = vadd.f32 %v1963, %v1971
    %v1974 = vtanh.pop %v1973
    %1976 = vrot.lane.b32.xlu0 %v1974, 64
    %v1977 = vpop.permute.xlu0 %1976
    %v1979 = vmul.f32 %v1958, %v1977
    %1981 = vrot.lane.b32.xlu0 %v1979, 32
    %v1982 = vpop.permute.xlu0 %1981
    %v1985 = vrot.slane %v1873, 2
    %1986 = vrot.lane.b32.xlu0 %v1985, 64
    %v1987 = vpop.permute.xlu0 %1986
    %v1989 = vsel %vm312, %v1982, %v1987
    %v1991 = vrot.slane %v1989, 6
    %v1992 = vsel %vm503, %v1991, 0
    %1994 = vmatprep.subr.mxu0 0.0
    %1995 = vmatpush1.msra.mxu0 %v47
    %1996 = vmatprep.subr.mxu0 0.0
    %1997 = vmatpush1.msra.mxu0 %v48
    %1998 = vmatprep.subr.mxu0 0.0
    %1999 = vmatpush1.msra.mxu0 %v49
    %2000 = vmatprep.subr.mxu0 0.0
    %2001 = vmatpush1.msra.mxu0 %v50
    %2002 = vmatprep.subr.mxu0 0.0
    %2003 = vmatpush1.msra.mxu0 %v51
    %2004 = vmatprep.subr.mxu0 0.0
    %2005 = vmatpush1.msra.mxu0 %v52
    %2006 = vmatprep.subr.mxu0 0.0
    %2007 = vmatpush1.msra.mxu0 %v53
    %2008 = vmatprep.subr.mxu0 0.0
    %2009 = vmatpush1.msra.mxu0 %v54
    %2010 = vmatprep.subr.mxu0 0.0
    %2011 = vmatpush1.msra.mxu0 0.0
    %2012 = vmatprep.subr.mxu0 0.0
    %2013 = vmatpush1.msra.mxu0 0.0
    %2014 = vmatprep.subr.mxu0 0.0
    %2015 = vmatpush1.msra.mxu0 0.0
    %2016 = vmatprep.subr.mxu0 0.0
    %2017 = vmatpush1.msra.mxu0 0.0
    %2018 = vmatprep.subr.mxu0 0.0
    %2019 = vmatpush1.msra.mxu0 0.0
    %2020 = vmatprep.subr.mxu0 0.0
    %2021 = vmatpush1.msra.mxu0 0.0
    %2022 = vmatprep.subr.mxu0 0.0
    %2023 = vmatpush1.msra.mxu0 0.0
    %2024 = vmatprep.subr.mxu0 0.0
    %2025 = vmatpush1.msra.mxu0 0.0
    %2026 = vmatprep.subr.mxu0 0.0
    %2027 = vmatpush1.msra.mxu0 0.0
    %2028 = vmatprep.subr.mxu0 0.0
    %2029 = vmatpush1.msra.mxu0 0.0
    %2030 = vmatprep.subr.mxu0 0.0
    %2031 = vmatpush1.msra.mxu0 0.0
    %2032 = vmatprep.subr.mxu0 0.0
    %2033 = vmatpush1.msra.mxu0 0.0
    %2034 = vmatprep.subr.mxu0 0.0
    %2035 = vmatpush1.msra.mxu0 0.0
    %2036 = vmatprep.subr.mxu0 0.0
    %2037 = vmatpush1.msra.mxu0 0.0
    %2038 = vmatprep.subr.mxu0 0.0
    %2039 = vmatpush1.msra.mxu0 0.0
    %2040 = vmatprep.subr.mxu0 0.0
    %2041 = vmatpush1.msra.mxu0 0.0
    %2042 = vmatprep.subr.mxu0 0.0
    %2043 = vmatpush1.msra.mxu0 0.0
    %2044 = vmatprep.subr.mxu0 0.0
    %2045 = vmatpush1.msra.mxu0 0.0
    %2046 = vmatprep.subr.mxu0 0.0
    %2047 = vmatpush1.msra.mxu0 0.0
    %2048 = vmatprep.subr.mxu0 0.0
    %2049 = vmatpush1.msra.mxu0 0.0
    %2050 = vmatprep.subr.mxu0 0.0
    %2051 = vmatpush1.msra.mxu0 0.0
    %2052 = vmatprep.subr.mxu0 0.0
    %2053 = vmatpush1.msra.mxu0 0.0
    %2054 = vmatprep.subr.mxu0 0.0
    %2055 = vmatpush1.msra.mxu0 0.0
    %2056 = vmatprep.subr.mxu0 0.0
    %2057 = vmatpush1.msra.mxu0 0.0
    %2058 = vmatprep.mubr.f32.mxu0 0.0
    %2059 = vmatmul.mubr.f32.gmra.mrb[0].mxu0 %v1992
    %v2060 = vpop.f32.mrb[0].mxu0
    %v2061 = vadd.f32 %v501, %v2060
    %v2062 = vpop.f32.mrb[0].mxu0
    %2063 = vdwg.mxu0
    %v2064 = vxor.u32 %v2061, 2147483648
    %v2065 = vmul.f32 %v2064, 1.442695
    %v2066 = vpow.pop %v2065
    %v2067 = vadd.f32 %v2066, 1.0
    %v2068 = vrcp.pop %v2067
    %v2069 = vmul.f32 1.0, %v2068
    %v2070 = vtanh.pop %v2061
    %v2071 = vmul.f32 %v2069, %v1867
    %2073 = vrot.lane.b32.xlu0 %v2070, 64
    %v2074 = vpop.permute.xlu0 %2073
    %v2076 = vmul.f32 %v2069, %v2074
    %2078 = vrot.lane.b32.xlu0 %v2076, 32
    %v2079 = vpop.permute.xlu0 %2078
    %v2081 = vadd.f32 %v2071, %v2079
    %v2082 = vtanh.pop %v2081
    %2084 = vrot.lane.b32.xlu0 %v2082, 64
    %v2085 = vpop.permute.xlu0 %2084
    %v2087 = vmul.f32 %v2069, %v2085
    %v2088 = vld [vmem:[%s8] sm:$0xff]
    %v2089 = vld [vmem:[%s8 + $0x8] sm:$0xff]
    %v2090 = vld [vmem:[%s8 + $0x10] sm:$0xff]
    %v2091 = vld [vmem:[%s8 + $0x18] sm:$0xff]
    %v2092 = vld [vmem:[%s9] sm:$0x1]
    %v2094 = vlaneseq
    %v2095 = vshrl.u32 %v2094, 7
    %v2096 = vsub.s32 0, %v2095
    %v2097 = vrot.slane %v2092, %v2096
    %2100 = vrot.lane.b32.xlu0 %v2087, 32
    %v2101 = vpop.permute.xlu0 %2100
    %v2102 = vsel %vm312, %v2101, 0
    %2104 = vmatprep.subr.mxu0 0.0
    %2105 = vmatpush1.msra.mxu0 %v2088
    %2106 = vmatprep.subr.mxu0 0.0
    %2107 = vmatpush1.msra.mxu0 %v2089
    %2108 = vmatprep.subr.mxu0 0.0
    %2109 = vmatpush1.msra.mxu0 %v2090
    %2110 = vmatprep.subr.mxu0 0.0
    %2111 = vmatpush1.msra.mxu0 %v2091
    %2112 = vmatprep.subr.mxu0 0.0
    %2113 = vmatpush1.msra.mxu0 0.0
    %2114 = vmatprep.subr.mxu0 0.0
    %2115 = vmatpush1.msra.mxu0 0.0
    %2116 = vmatprep.subr.mxu0 0.0
    %2117 = vmatpush1.msra.mxu0 0.0
    %2118 = vmatprep.subr.mxu0 0.0
    %2119 = vmatpush1.msra.mxu0 0.0
    %2120 = vmatprep.subr.mxu0 0.0
    %2121 = vmatpush1.msra.mxu0 0.0
    %2122 = vmatprep.subr.mxu0 0.0
    %2123 = vmatpush1.msra.mxu0 0.0
    %2124 = vmatprep.subr.mxu0 0.0
    %2125 = vmatpush1.msra.mxu0 0.0
    %2126 = vmatprep.subr.mxu0 0.0
    %2127 = vmatpush1.msra.mxu0 0.0
    %2128 = vmatprep.subr.mxu0 0.0
    %2129 = vmatpush1.msra.mxu0 0.0
    %2130 = vmatprep.subr.mxu0 0.0
    %2131 = vmatpush1.msra.mxu0 0.0
    %2132 = vmatprep.subr.mxu0 0.0
    %2133 = vmatpush1.msra.mxu0 0.0
    %2134 = vmatprep.subr.mxu0 0.0
    %2135 = vmatpush1.msra.mxu0 0.0
    %2136 = vmatprep.subr.mxu0 0.0
    %2137 = vmatpush1.msra.mxu0 0.0
    %2138 = vmatprep.subr.mxu0 0.0
    %2139 = vmatpush1.msra.mxu0 0.0
    %2140 = vmatprep.subr.mxu0 0.0
    %2141 = vmatpush1.msra.mxu0 0.0
    %2142 = vmatprep.subr.mxu0 0.0
    %2143 = vmatpush1.msra.mxu0 0.0
    %2144 = vmatprep.subr.mxu0 0.0
    %2145 = vmatpush1.msra.mxu0 0.0
    %2146 = vmatprep.subr.mxu0 0.0
    %2147 = vmatpush1.msra.mxu0 0.0
    %2148 = vmatprep.subr.mxu0 0.0
    %2149 = vmatpush1.msra.mxu0 0.0
    %2150 = vmatprep.subr.mxu0 0.0
    %2151 = vmatpush1.msra.mxu0 0.0
    %2152 = vmatprep.subr.mxu0 0.0
    %2153 = vmatpush1.msra.mxu0 0.0
    %2154 = vmatprep.subr.mxu0 0.0
    %2155 = vmatpush1.msra.mxu0 0.0
    %2156 = vmatprep.subr.mxu0 0.0
    %2157 = vmatpush1.msra.mxu0 0.0
    %2158 = vmatprep.subr.mxu0 0.0
    %2159 = vmatpush1.msra.mxu0 0.0
    %2160 = vmatprep.subr.mxu0 0.0
    %2161 = vmatpush1.msra.mxu0 0.0
    %2162 = vmatprep.subr.mxu0 0.0
    %2163 = vmatpush1.msra.mxu0 0.0
    %2164 = vmatprep.subr.mxu0 0.0
    %2165 = vmatpush1.msra.mxu0 0.0
    %2166 = vmatprep.subr.mxu0 0.0
    %2167 = vmatpush1.msra.mxu0 0.0
    %2168 = vmatprep.mubr.f32.mxu0 0.0
    %2169 = vmatmul.mubr.f32.gmra.mrb[0].mxu0 %v2102
    %v2170 = vpop.f32.mrb[0].mxu0
    %v2171 = vadd.f32 %v2097, %v2170
    %v2172 = vpop.f32.mrb[0].mxu0
    %2173 = vdwg.mxu0
    %vm2174 = vcmask 25600
    %2175 = vst.msk [vmem:[#allocation2] sm:$0x3] %vm2174, %v2171
    // Predicated region
    $region42: #{tpu_custom_call.1} parent=1 // pred_check
      _
    $region43: #{tpu_custom_call.1} parent=1 // pred_check_branch
      %2177 = sbr.rel (0) target = $region45
    $region44: #{tpu_custom_call.1} parent=1 // pred_region
      %s2179 = ssub.s32 32, 32
      %2180 = vsyncadd [#allocation3], %s2179
      %s2182 = sshll.u32 [#allocation2], 4
      %s2183 = int_to_ptr.vmem [resolvable:$true] %s2182
      %2185 = dma.vmem_to_hbm [thread:$0]  %s2183, 32, %s10, [#allocation3]
    $region45: #{tpu_custom_call.1} parent=1 // pred_fallthru
      _
    // Predicated region
    $region46: #{tpu_custom_call.1} parent=1 // pred_check
      _
    $region47: #{tpu_custom_call.1} parent=1 // pred_check_branch
      %2187 = sbr.rel (0) target = $region49
    $region48: #{tpu_custom_call.1} parent=1 // pred_region
      %2188 = dma.done [#allocation3], 32
    $region49: #{tpu_custom_call.1} parent=1 // pred_fallthru
      _
    %2189 = vsyncpa [#allocation3], 1

</llo_original>
